<compile_context>
chip_gen: v6e
topology: v6e:2x2x1
jax: 0.10.0
libtpu: 0.0.40
codegen_flags: <defaults>
</compile_context>

<pallas_src>
import numpy as np
import jax
import jax.numpy as jnp
from jax import lax
from jax.experimental import pallas as pl
from jax.experimental.pallas import tpu as pltpu


# --------------------------- generation-aware knobs ---------------------------

def _vmem_capacity_bytes():
    try:
        info = pltpu.get_tpu_info()
        cap = getattr(info, "vmem_capacity_bytes", None)
        if cap:
            return int(cap)
    except Exception:
        pass
    return 64 * 1024 * 1024            # conservative fallback (v7x-sized)


_VMEM_CAP = _vmem_capacity_bytes()
# v7x (64 MiB physical) -> 32 MiB scoped limit; v5e/v6e (128 MiB) -> 64 MiB.
_VMEM_LIMIT = min(_VMEM_CAP // 2, 100 * 1024 * 1024)
_ROW_CAP_A = 2048 if _VMEM_CAP >= 128 * 1024 * 1024 else 1024
_ROW_CAP_B = 2048 if _VMEM_CAP >= 128 * 1024 * 1024 else 1024

# small version-skew shim (pltpu.CompilerParams is the current name)
_CP = getattr(pltpu, "CompilerParams", None) or getattr(pltpu, "TPUCompilerParams", None)


def _mosaic(dims):
    return _CP(dimension_semantics=dims, vmem_limit_bytes=_VMEM_LIMIT)


# ------------------------------ Pallas kernels ------------------------------

def _conv_a_kernel(a_ref, w1_ref, wsc_ref, s2_ref, b2_ref, h2_ref, sc_ref):
    """Tap-accumulated conv1 (stride folded into the tap gather), accumulating
       directly into the resident output block, plus the 1x1 strided shortcut
       (centre tap only) and a fused BN2+ReLU epilogue on the conv1 branch."""
    k = pl.program_id(1)

    @pl.when(k == 0)
    def _init():
        h2_ref[...] = jnp.zeros_like(h2_ref)

    a = a_ref[...]
    # weights are VMEM-resident (constant block index); pick this tap's slice.
    h2_ref[...] += jnp.dot(a, w1_ref[k], preferred_element_type=jnp.float32)

    @pl.when(k == 4)      # 1x1/stride shortcut == centre tap of the 3x3 stencil
    def _shortcut():
        sc_ref[...] = jnp.dot(a, wsc_ref[...], preferred_element_type=jnp.float32)

    @pl.when(k == pl.num_programs(1) - 1)
    def _fin():
        h2_ref[...] = jnp.maximum(h2_ref[...] * s2_ref[...] + b2_ref[...], 0.0)


def _conv_b_kernel(a_ref, w2_ref, sc_ref, s3_ref, b3_ref, o_ref, pool_ref):
    """Tap-accumulated conv2 -> +shortcut -> BN3+ReLU -> 4x4 window average
       pooling.  Rows are window-major (one pooling window == 16 consecutive
       rows), so pooling is a tile-aligned reshape + sublane-axis reduction."""
    k = pl.program_id(1)

    @pl.when(k == 0)
    def _init():
        o_ref[...] = jnp.zeros_like(o_ref)

    o_ref[...] += jnp.dot(a_ref[...], w2_ref[k], preferred_element_type=jnp.float32)

    @pl.when(k == pl.num_programs(1) - 1)
    def _fin():
        out = jnp.maximum((o_ref[...] + sc_ref[...]) * s3_ref[...] + b3_ref[...],
                          0.0)
        o_ref[...] = out
        wpt = pool_ref.shape[0]
        win = out.shape[0] // wpt
        pool_ref[...] = jnp.sum(out.reshape(wpt, win, out.shape[-1]),
                                axis=1) * (1.0 / win)


def _mask_pool_kernel(x_ref, m_ref, o_ref, pool_ref):
    """Per-window mask multiply (sublane broadcast of the small per-window mask
       tile; the full-size mask tensor is never materialized) + second 4x4
       window average pooling."""
    wpt, C = m_ref.shape
    tm = x_ref.shape[0]
    win = tm // wpt
    x = x_ref[...].reshape(wpt, win, C)
    masked = x * m_ref[...][:, None, :]
    o_ref[...] = masked.reshape(tm, C)
    pool_ref[...] = jnp.sum(masked, axis=1) * (1.0 / win)


def _linear_kernel(x_ref, w_ref, b_ref, o_ref):
    o_ref[...] = jnp.dot(x_ref[...], w_ref[...],
                         preferred_element_type=jnp.float32) + b_ref[...]


# ----------------------------- tile-size helper ------------------------------

def _row_tile(M, step, cap):
    """Largest multiple of `step` that divides M and is <= cap (falls back to
       the full extent M).  TODO(synk): pad M in the wrapper so the fallback
       never produces one giant un-pipelined block at awkward sizes."""
    best = M
    t = step
    while t <= min(M, cap):
        if M % t == 0:
            best = t
        t += step
    return best


# ----------------------------- pallas_call wrappers --------------------------

def _fused_conv_a(taps, w1, wsc, s2, b2):
    K9, M, Cin = taps.shape
    Cmid = w1.shape[-1]
    Cout = wsc.shape[-1]
    tm = _row_tile(M, 8, _ROW_CAP_A)
    grid = (M // tm, K9)
    return pl.pallas_call(
        _conv_a_kernel,
        grid=grid,
        in_specs=[
            pl.BlockSpec((None, tm, Cin), lambda i, k: (k, i, 0)),   # tap stream
            pl.BlockSpec((K9, Cin, Cmid), lambda i, k: (0, 0, 0)),   # resident w1
            pl.BlockSpec((Cin, Cout), lambda i, k: (0, 0)),          # resident wsc
            pl.BlockSpec((1, Cmid), lambda i, k: (0, 0)),
            pl.BlockSpec((1, Cmid), lambda i, k: (0, 0)),
        ],
        out_specs=[
            pl.BlockSpec((tm, Cmid), lambda i, k: (i, 0)),
            pl.BlockSpec((tm, Cout), lambda i, k: (i, 0)),
        ],
        out_shape=(jax.ShapeDtypeStruct((M, Cmid), jnp.float32),
                   jax.ShapeDtypeStruct((M, Cout), jnp.float32)),
        compiler_params=_mosaic(("parallel", "arbitrary")),
    )(taps, w1, wsc, s2, b2)


def _fused_conv_b(taps, w2, sc, s3, b3, win=16):
    K9, M, Cmid = taps.shape
    Cout = w2.shape[-1]
    tm = _row_tile(M, win * 8, _ROW_CAP_B)
    wpt = tm // win
    n_w = M // win
    grid = (M // tm, K9)
    return pl.pallas_call(
        _conv_b_kernel,
        grid=grid,
        in_specs=[
            pl.BlockSpec((None, tm, Cmid), lambda i, k: (k, i, 0)),  # tap stream
            pl.BlockSpec((K9, Cmid, Cout), lambda i, k: (0, 0, 0)),  # resident w2
            pl.BlockSpec((tm, Cout), lambda i, k: (i, 0)),           # shortcut
            pl.BlockSpec((1, Cout), lambda i, k: (0, 0)),
            pl.BlockSpec((1, Cout), lambda i, k: (0, 0)),
        ],
        out_specs=[
            pl.BlockSpec((tm, Cout), lambda i, k: (i, 0)),
            pl.BlockSpec((wpt, Cout), lambda i, k: (i, 0)),
        ],
        out_shape=(jax.ShapeDtypeStruct((M, Cout), jnp.float32),
                   jax.ShapeDtypeStruct((n_w, Cout), jnp.float32)),
        compiler_params=_mosaic(("parallel", "arbitrary")),
    )(taps, w2, sc, s3, b3)


def _mask_pool(out_wm, mask_wm, win=16):
    M, C = out_wm.shape
    n_w = mask_wm.shape[0]
    tm = _row_tile(M, win * 8, _ROW_CAP_B)
    wpt = tm // win
    grid = (M // tm,)
    return pl.pallas_call(
        _mask_pool_kernel,
        grid=grid,
        in_specs=[
            pl.BlockSpec((tm, C), lambda i: (i, 0)),
            pl.BlockSpec((wpt, C), lambda i: (i, 0)),
        ],
        out_specs=[
            pl.BlockSpec((tm, C), lambda i: (i, 0)),
            pl.BlockSpec((wpt, C), lambda i: (i, 0)),
        ],
        out_shape=(jax.ShapeDtypeStruct((M, C), jnp.float32),
                   jax.ShapeDtypeStruct((n_w, C), jnp.float32)),
        compiler_params=_mosaic(("parallel",)),
    )(out_wm, mask_wm)


def _linear(x, w, b):
    # FC shapes are tiny ((N, 4C) x (4C, classes)); a single full block is fine.
    M, K = x.shape
    Nn = w.shape[-1]
    return pl.pallas_call(
        _linear_kernel,
        grid=(1,),
        in_specs=[pl.BlockSpec((M, K), lambda i: (0, 0)),
                  pl.BlockSpec((K, Nn), lambda i: (0, 0)),
                  pl.BlockSpec((1, Nn), lambda i: (0, 0))],
        out_specs=pl.BlockSpec((M, Nn), lambda i: (0, 0)),
        out_shape=jax.ShapeDtypeStruct((M, Nn), jnp.float32),
        compiler_params=_mosaic(("arbitrary",)),
    )(x, w, b)


# ------------------------------- JAX glue -----------------------------------
# (layout plumbing only: BN fold, tap gather, window-major index construction)

def _fold_bn(gamma, beta, mean, var, eps=1e-5):
    scale = gamma / jnp.sqrt(var + eps)
    shift = beta - mean * scale
    return scale, shift                                  # 1-D (C,)


def _tap_stack(xpad, k, stride, Ho, Wo):
    """(N, Hp, Wp, C) zero-padded activation -> (k*k, N*Ho*Wo, C) tap stack."""
    C = xpad.shape[-1]
    taps = []
    for kh in range(k):
        for kw in range(k):
            v = xpad[:, kh:kh + Ho * stride:stride,
                     kw:kw + Wo * stride:stride, :]
            taps.append(v.reshape(-1, C))
    return jnp.stack(taps, axis=0)


def _window_perm(N, Ho, Wo, p):
    """Permutation taking standard (n, ho, wo) row order to window-major
       (n, bh, bw, dh, dw) order (one pxp pooling window = p*p rows)."""
    nbh, nbw = Ho // p, Wo // p
    idx = np.arange(N * Ho * Wo).reshape(N, nbh, p, nbw, p)
    idx = idx.transpose(0, 1, 3, 2, 4).reshape(-1)
    return jnp.asarray(idx, dtype=jnp.int32)


def _tap_gather_idx_wm(N, Ho, Wo, p):
    """(9, N*Ho*Wo) int32 gather rows into flattened h2 (index N*Ho*Wo == the
       appended zero 'pad' row), producing the conv2 taps already in
       window-major output order (the pooling permutation composed into the
       gather -- no second permute pass)."""
    nbh, nbw = Ho // p, Wo // p
    g = np.indices((N, nbh, nbw, p, p))
    n = g[0].reshape(-1)
    ho = (g[1] * p + g[3]).reshape(-1)
    wo = (g[2] * p + g[4]).reshape(-1)
    M = N * Ho * Wo
    idx = np.empty((9, M), np.int32)
    t = 0
    for kh in range(3):
        for kw in range(3):
            hi = ho + kh - 1
            wi = wo + kw - 1
            ok = (hi >= 0) & (hi < Ho) & (wi >= 0) & (wi < Wo)
            idx[t] = np.where(ok, n * Ho * Wo + hi * Wo + wi, M)
            t += 1
    return jnp.asarray(idx)


# ---------------------------- forward (Pallas) -------------------------------

def self_preact_block_forward(x_nchw, params, stride=2, mxu_dtype=jnp.float32):
    N, Cin, H, W = x_nchw.shape
    Cmid = params["conv1_w"].shape[-1]
    Cout = params["conv2_w"].shape[-1]
    x = jnp.transpose(x_nchw, (0, 2, 3, 1)).astype(jnp.float32)   # NHWC

    Ho = (H + 2 - 3) // stride + 1
    Wo = (W + 2 - 3) // stride + 1
    M2 = N * Ho * Wo
    P = 4                                     # avg_pool2d(out, 4)
    win = P * P
    nbh, nbw = Ho // P, Wo // P
    nb = nbh * nbw

    s1, b1 = _fold_bn(*params["bn1"])
    s2, b2 = _fold_bn(*params["bn2"])
    s3, b3 = _fold_bn(*params["bn3"])

    # --- stage A: relu(bn1(x)) -> (conv1 stride s || 1x1 strided shortcut)
    #              -> bn2+relu on the conv1 branch ----------------------------
    # BN1+ReLU once per element here (fuses into the tap-build producer); the
    # conv zero-pad is then exact (no neutral-pad gamma==0 edge case).
    a1 = jnp.maximum(x * s1 + b1, 0.0).astype(mxu_dtype)
    a1p = jnp.pad(a1, ((0, 0), (1, 1), (1, 1), (0, 0)))
    taps1 = _tap_stack(a1p, 3, stride, Ho, Wo)                    # (9, M2, Cin)

    w1 = params["conv1_w"].reshape(9, Cin, Cmid).astype(mxu_dtype)
    wsc = params["sc_w"].astype(mxu_dtype)                        # (Cin, Cout)

    h2, shortcut = _fused_conv_a(taps1, w1, wsc, s2[None, :], b2[None, :])

    # --- stage B: conv2 (stride 1) + shortcut + bn3 + relu + 4x4 pooling ------
    perm = _window_perm(N, Ho, Wo, P)
    idx2 = _tap_gather_idx_wm(N, Ho, Wo, P)
    h2_ext = jnp.concatenate([h2.astype(mxu_dtype),
                              jnp.zeros((1, Cmid), mxu_dtype)], axis=0)
    taps2_wm = jnp.take(h2_ext, idx2, axis=0)                     # (9, M2, Cmid)
    sc_wm = shortcut[perm]
    w2 = params["conv2_w"].reshape(9, Cmid, Cout).astype(mxu_dtype)

    out_wm, pooled1 = _fused_conv_b(taps2_wm, w2, sc_wm,
                                    s3[None, :], b3[None, :], win=win)

    fc_wT = params["fc_w"].T.astype(jnp.float32)
    fc_b = params["fc_b"][None, :].astype(jnp.float32)

    def fc_from(pooled):   # pooled rows are (n, window)-ordered; fc wants (c, window)
        fc_in = pooled.reshape(N, nb, Cout).transpose(0, 2, 1).reshape(N, nb * Cout)
        return _linear(fc_in, fc_wT, fc_b)

    fc_out1 = fc_from(pooled1)

    # eval branch: mask = fc.weight[argmax(fc_out1)]  (argmax ties may break
    # differently from PyTorch in rare exact-tie cases).
    pred = jnp.argmax(fc_out1, axis=1)
    mask_wm = params["fc_w"][pred].reshape(N * nb, Cout).astype(jnp.float32)

    # --- stage C: per-window mask multiply + second 4x4 pooling ----------------
    out_masked_wm, pooled2 = _mask_pool(out_wm, mask_wm, win=win)
    f_out2 = fc_from(pooled2)

    out_nchw = (out_masked_wm.reshape(N, nbh, nbw, P, P, Cout)
                .transpose(0, 5, 1, 3, 2, 4)
                .reshape(N, Cout, Ho, Wo))
    return out_nchw, fc_out1, f_out2


# ------------------------ pure-JAX reference (check) -------------------------

def reference_forward(x, params, stride=2):
    eps = 1e-5

    def bn(z, g, b, m, v):
        return (z - m[None, :, None, None]) / jnp.sqrt(v[None, :, None, None] + eps) \
               * g[None, :, None, None] + b[None, :, None, None]

    h1 = jax.nn.relu(bn(x, *params["bn1"]))
    wsc = params["sc_w"].T[:, :, None, None]
    sc = lax.conv_general_dilated(h1, wsc, (stride, stride), "VALID",
                                  dimension_numbers=("NCHW", "OIHW", "NCHW"))
    w1 = jnp.transpose(params["conv1_w"], (3, 2, 0, 1))
    c1 = lax.conv_general_dilated(h1, w1, (stride, stride), ((1, 1), (1, 1)),
                                  dimension_numbers=("NCHW", "OIHW", "NCHW"))
    h2 = jax.nn.relu(bn(c1, *params["bn2"]))
    w2 = jnp.transpose(params["conv2_w"], (3, 2, 0, 1))
    c2 = lax.conv_general_dilated(h2, w2, (1, 1), ((1, 1), (1, 1)),
                                  dimension_numbers=("NCHW", "OIHW", "NCHW"))
    out = jax.nn.relu(bn(c2 + sc, *params["bn3"]))
    N, C, H, W = out.shape
    pooled = out.reshape(N, C, H // 4, 4, W // 4, 4).mean(axis=(3, 5))
    fc_out1 = pooled.reshape(N, -1) @ params["fc_w"].T + params["fc_b"]
    pred = jnp.argmax(fc_out1, axis=1)
    mask = params["fc_w"][pred].reshape(N, 4, C)
    hh, ww = jnp.meshgrid(jnp.arange(H), jnp.arange(W), indexing="ij")
    k_map = (hh // 4) * (W // 4) + (ww // 4)
    mask_full = jnp.transpose(mask[:, k_map, :], (0, 3, 1, 2))
    out_ = out * mask_full
    pooled2 = out_.reshape(N, C, H // 4, 4, W // 4, 4).mean(axis=(3, 5))
    f_out2 = pooled2.reshape(N, -1) @ params["fc_w"].T + params["fc_b"]
    return out_, fc_out1, f_out2


# ------------------------------- init & main ---------------------------------

def _bn_init(key, c):
    k1, k2, k3, k4 = jax.random.split(key, 4)
    gamma = 1.0 + 0.1 * jax.random.normal(k1, (c,), jnp.float32)
    beta = 0.1 * jax.random.normal(k2, (c,), jnp.float32)
    mean = 0.1 * jax.random.normal(k3, (c,), jnp.float32)
    var = 1.0 + 0.1 * jax.random.uniform(k4, (c,), jnp.float32)
    return (gamma, beta, mean, var)


def init_params(key, in_planes, planes, num_classes):
    keys = jax.random.split(key, 8)
    return {
        "bn1": _bn_init(keys[0], in_planes),
        "conv1_w": 0.2 * jax.random.normal(keys[1], (3, 3, in_planes, planes), jnp.float32),
        "bn2": _bn_init(keys[2], planes),
        "conv2_w": 0.2 * jax.random.normal(keys[3], (3, 3, planes, planes), jnp.float32),
        "sc_w": 0.2 * jax.random.normal(keys[4], (in_planes, planes), jnp.float32),
        "bn3": _bn_init(keys[5], planes),                       # the externally-passed `bn`
        "fc_w": 0.2 * jax.random.normal(keys[6], (num_classes, 4 * planes), jnp.float32),
        "fc_b": 0.1 * jax.random.normal(keys[7], (num_classes,), jnp.float32),
    }


if __name__ == "__main__":
    key = jax.random.PRNGKey(0)
    kx, kp = jax.random.split(key)
    in_planes, planes, stride, num_classes = 4, 4, 2, 10
    x = jax.random.normal(kx, (2, in_planes, 16, 16), jnp.float32)
    params = init_params(kp, in_planes, planes, num_classes)

    fwd = jax.jit(self_preact_block_forward,
                  static_argnames=("stride", "mxu_dtype"))

    # f32 MXU path: tight comparison against the pure-JAX reference.
    out_, fc_out1, f_out2 = fwd(x, params, stride=stride)
    jax.block_until_ready((out_, fc_out1, f_out2))
    ref_out, ref_fc1, ref_fc2 = reference_forward(x, params, stride=stride)
    np.testing.assert_allclose(np.asarray(out_), np.asarray(ref_out), rtol=1e-4, atol=1e-4)
    np.testing.assert_allclose(np.asarray(fc_out1), np.asarray(ref_fc1), rtol=1e-4, atol=1e-4)
    np.testing.assert_allclose(np.asarray(f_out2), np.asarray(ref_fc2), rtol=1e-4, atol=1e-4)

    # bf16 MXU path (f32 accumulation): halves tap-stream HBM bytes and uses the
    # bf16-native MXU.  The mask branch depends on argmax(fc_out1), so a strict
    # cross-precision comparison is ill-posed; check it runs and stays finite.
    out_b, fc1_b, f2_b = fwd(x, params, stride=stride, mxu_dtype=jnp.bfloat16)
    jax.block_until_ready((out_b, fc1_b, f2_b))
    assert bool(jnp.all(jnp.isfinite(out_b)))
    assert bool(jnp.all(jnp.isfinite(fc1_b)))
    assert bool(jnp.all(jnp.isfinite(f2_b)))

    print("KERNEL_OK")
</pallas_src>

<mosaic_0001>
module attributes {stable_mosaic.version = 11 : i64} {
  func.func @_conv_a_kernel(%arg0: i32, %arg1: i32, %arg2: memref<1x128x4xf32, #tpu.memory_space<vmem>>, %arg3: memref<9x4x4xf32, #tpu.memory_space<vmem>>, %arg4: memref<4x4xf32, #tpu.memory_space<vmem>>, %arg5: memref<1x4xf32, #tpu.memory_space<vmem>>, %arg6: memref<1x4xf32, #tpu.memory_space<vmem>>, %arg7: memref<128x4xf32, #tpu.memory_space<vmem>>, %arg8: memref<128x4xf32, #tpu.memory_space<vmem>>) attributes {dimension_semantics = [#tpu.dimension_semantics<parallel>, #tpu.dimension_semantics<arbitrary>], iteration_bounds = array<i64: 1, 9>, scalar_prefetch = 0 : i64, scratch_operands = 0 : i64, tpu.core_type = #tpu.core_type<tc>, window_params = [{transform_indices = @transform_0, window_bounds = array<i64: 1, 128, 4>}, {pipeline_mode = #tpu.pipeline_mode<synchronous>, transform_indices = @transform_1, window_bounds = array<i64: 9, 4, 4>}, {pipeline_mode = #tpu.pipeline_mode<synchronous>, transform_indices = @transform_2, window_bounds = array<i64: 4, 4>}, {pipeline_mode = #tpu.pipeline_mode<synchronous>, transform_indices = @transform_3, window_bounds = array<i64: 1, 4>}, {pipeline_mode = #tpu.pipeline_mode<synchronous>, transform_indices = @transform_4, window_bounds = array<i64: 1, 4>}, {transform_indices = @transform_5, window_bounds = array<i64: 128, 4>}, {transform_indices = @transform_6, window_bounds = array<i64: 128, 4>}]} {
    %c0_i32 = arith.constant 0 : i32
    %0 = arith.cmpi eq, %arg1, %c0_i32 : i32
    %1 = arith.extui %0 : i1 to i32
    %c0_i32_0 = arith.constant 0 : i32
    %2 = arith.cmpi ne, %1, %c0_i32_0 : i32
    scf.if %2 {
      %cst_11 = arith.constant 0.000000e+00 : f32
      %18 = vector.broadcast %cst_11 : f32 to vector<128x4xf32>
      %c0_12 = arith.constant 0 : index
      %c0_13 = arith.constant 0 : index
      %19 = vector.load %arg7[%c0_12, %c0_13] : memref<128x4xf32, #tpu.memory_space<vmem>>, vector<128x4xf32>
      tpu.vector_store %arg7[%c0_12, %c0_13], %18 {strides = array<i32>} : memref<128x4xf32, #tpu.memory_space<vmem>>, vector<128x4xf32>,
    } else {
    }
    %c0 = arith.constant 0 : index
    %c0_1 = arith.constant 0 : index
    %c0_2 = arith.constant 0 : index
    %3 = vector.load %arg2[%c0, %c0_1, %c0_2] : memref<1x128x4xf32, #tpu.memory_space<vmem>>, vector<1x128x4xf32>
    %4 = vector.shape_cast %3 : vector<1x128x4xf32> to vector<128x4xf32>
    %c0_3 = arith.constant 0 : index
    %c0_4 = arith.constant 0 : index
    %5 = vector.load %arg7[%c0_3, %c0_4] : memref<128x4xf32, #tpu.memory_space<vmem>>, vector<128x4xf32>
    %6 = arith.index_cast %arg1 : i32 to index
    %c0_5 = arith.constant 0 : index
    %c0_6 = arith.constant 0 : index
    %7 = vector.load %arg3[%6, %c0_5, %c0_6] : memref<9x4x4xf32, #tpu.memory_space<vmem>>, vector<1x4x4xf32>
    %8 = vector.shape_cast %7 : vector<1x4x4xf32> to vector<4x4xf32>
    %cst = arith.constant dense<0.000000e+00> : vector<128x4xf32>
    %9 = tpu.matmul %4, %8, %cst {dimension_numbers = #tpu.dot_dimension_numbers<[1], [0], [0], [1], [0, 0, 1, 1], [], []>} : vector<128x4xf32>, vector<4x4xf32>, vector<128x4xf32> -> vector<128x4xf32>
    %10 = arith.addf %5, %9 : vector<128x4xf32>
    %c0_7 = arith.constant 0 : index
    %c0_8 = arith.constant 0 : index
    %11 = vector.load %arg7[%c0_7, %c0_8] : memref<128x4xf32, #tpu.memory_space<vmem>>, vector<128x4xf32>
    tpu.vector_store %arg7[%c0_7, %c0_8], %10 {strides = array<i32>} : memref<128x4xf32, #tpu.memory_space<vmem>>, vector<128x4xf32>,
    %c4_i32 = arith.constant 4 : i32
    %12 = arith.cmpi eq, %arg1, %c4_i32 : i32
    %13 = arith.extui %12 : i1 to i32
    %c0_i32_9 = arith.constant 0 : i32
    %14 = arith.cmpi ne, %13, %c0_i32_9 : i32
    scf.if %14 {
      %c0_11 = arith.constant 0 : index
      %c0_12 = arith.constant 0 : index
      %18 = vector.load %arg4[%c0_11, %c0_12] : memref<4x4xf32, #tpu.memory_space<vmem>>, vector<4x4xf32>
      %cst_13 = arith.constant dense<0.000000e+00> : vector<128x4xf32>
      %19 = tpu.matmul %4, %18, %cst_13 {dimension_numbers = #tpu.dot_dimension_numbers<[1], [0], [0], [1], [0, 0, 1, 1], [], []>} : vector<128x4xf32>, vector<4x4xf32>, vector<128x4xf32> -> vector<128x4xf32>
      %c0_14 = arith.constant 0 : index
      %c0_15 = arith.constant 0 : index
      %20 = vector.load %arg8[%c0_14, %c0_15] : memref<128x4xf32, #tpu.memory_space<vmem>>, vector<128x4xf32>
      tpu.vector_store %arg8[%c0_14, %c0_15], %19 {strides = array<i32>} : memref<128x4xf32, #tpu.memory_space<vmem>>, vector<128x4xf32>,
    } else {
    }
    %c8_i32 = arith.constant 8 : i32
    %15 = arith.cmpi eq, %arg1, %c8_i32 : i32
    %16 = arith.extui %15 : i1 to i32
    %c0_i32_10 = arith.constant 0 : i32
    %17 = arith.cmpi ne, %16, %c0_i32_10 : i32
    scf.if %17 {
      %c0_11 = arith.constant 0 : index
      %c0_12 = arith.constant 0 : index
      %18 = vector.load %arg7[%c0_11, %c0_12] : memref<128x4xf32, #tpu.memory_space<vmem>>, vector<128x4xf32>
      %c0_13 = arith.constant 0 : index
      %c0_14 = arith.constant 0 : index
      %19 = vector.load %arg5[%c0_13, %c0_14] : memref<1x4xf32, #tpu.memory_space<vmem>>, vector<1x4xf32>
      %20 = vector.broadcast %19 : vector<1x4xf32> to vector<128x4xf32>
      %21 = arith.mulf %18, %20 : vector<128x4xf32>
      %c0_15 = arith.constant 0 : index
      %c0_16 = arith.constant 0 : index
      %22 = vector.load %arg6[%c0_15, %c0_16] : memref<1x4xf32, #tpu.memory_space<vmem>>, vector<1x4xf32>
      %23 = vector.broadcast %22 : vector<1x4xf32> to vector<128x4xf32>
      %24 = arith.addf %21, %23 : vector<128x4xf32>
      %cst_17 = arith.constant 0.000000e+00 : f32
      %25 = vector.broadcast %cst_17 : f32 to vector<128x4xf32>
      %26 = arith.maximumf %24, %25 : vector<128x4xf32>
      %c0_18 = arith.constant 0 : index
      %c0_19 = arith.constant 0 : index
      %27 = vector.load %arg7[%c0_18, %c0_19] : memref<128x4xf32, #tpu.memory_space<vmem>>, vector<128x4xf32>
      tpu.vector_store %arg7[%c0_18, %c0_19], %26 {strides = array<i32>} : memref<128x4xf32, #tpu.memory_space<vmem>>, vector<128x4xf32>,
    } else {
    }
    return
  }
  func.func @transform_0(%arg0: i32, %arg1: i32) -> (i32, i32, i32) {
    %c0_i32 = arith.constant 0 : i32
    %c0_i32_0 = arith.constant 0 : i32
    return %arg1, %arg0, %c0_i32 : i32, i32, i32
  }
  func.func @transform_1(%arg0: i32, %arg1: i32) -> (i32, i32, i32) {
    %c0_i32 = arith.constant 0 : i32
    %c0_i32_0 = arith.constant 0 : i32
    %c0_i32_1 = arith.constant 0 : i32
    %c0_i32_2 = arith.constant 0 : i32
    return %c0_i32, %c0_i32_0, %c0_i32_1 : i32, i32, i32
  }
  func.func @transform_2(%arg0: i32, %arg1: i32) -> (i32, i32) {
    %c0_i32 = arith.constant 0 : i32
    %c0_i32_0 = arith.constant 0 : i32
    %c0_i32_1 = arith.constant 0 : i32
    return %c0_i32, %c0_i32_0 : i32, i32
  }
  func.func @transform_3(%arg0: i32, %arg1: i32) -> (i32, i32) {
    %c0_i32 = arith.constant 0 : i32
    %c0_i32_0 = arith.constant 0 : i32
    %c0_i32_1 = arith.constant 0 : i32
    return %c0_i32, %c0_i32_0 : i32, i32
  }
  func.func @transform_4(%arg0: i32, %arg1: i32) -> (i32, i32) {
    %c0_i32 = arith.constant 0 : i32
    %c0_i32_0 = arith.constant 0 : i32
    %c0_i32_1 = arith.constant 0 : i32
    return %c0_i32, %c0_i32_0 : i32, i32
  }
  func.func @transform_5(%arg0: i32, %arg1: i32) -> (i32, i32) {
    %c0_i32 = arith.constant 0 : i32
    %c0_i32_0 = arith.constant 0 : i32
    return %arg0, %c0_i32 : i32, i32
  }
  func.func @transform_6(%arg0: i32, %arg1: i32) -> (i32, i32) {
    %c0_i32 = arith.constant 0 : i32
    %c0_i32_0 = arith.constant 0 : i32
    return %arg0, %c0_i32 : i32, i32
  }
}

module attributes {stable_mosaic.version = 11 : i64} {
  func.func @_conv_b_kernel(%arg0: i32, %arg1: i32, %arg2: memref<1x128x4xf32, #tpu.memory_space<vmem>>, %arg3: memref<9x4x4xf32, #tpu.memory_space<vmem>>, %arg4: memref<128x4xf32, #tpu.memory_space<vmem>>, %arg5: memref<1x4xf32, #tpu.memory_space<vmem>>, %arg6: memref<1x4xf32, #tpu.memory_space<vmem>>, %arg7: memref<128x4xf32, #tpu.memory_space<vmem>>, %arg8: memref<8x4xf32, #tpu.memory_space<vmem>>) attributes {dimension_semantics = [#tpu.dimension_semantics<parallel>, #tpu.dimension_semantics<arbitrary>], iteration_bounds = array<i64: 1, 9>, scalar_prefetch = 0 : i64, scratch_operands = 0 : i64, tpu.core_type = #tpu.core_type<tc>, window_params = [{transform_indices = @transform_0, window_bounds = array<i64: 1, 128, 4>}, {pipeline_mode = #tpu.pipeline_mode<synchronous>, transform_indices = @transform_1, window_bounds = array<i64: 9, 4, 4>}, {transform_indices = @transform_2, window_bounds = array<i64: 128, 4>}, {pipeline_mode = #tpu.pipeline_mode<synchronous>, transform_indices = @transform_3, window_bounds = array<i64: 1, 4>}, {pipeline_mode = #tpu.pipeline_mode<synchronous>, transform_indices = @transform_4, window_bounds = array<i64: 1, 4>}, {transform_indices = @transform_5, window_bounds = array<i64: 128, 4>}, {transform_indices = @transform_6, window_bounds = array<i64: 8, 4>}]} {
    %c0_i32 = arith.constant 0 : i32
    %0 = arith.cmpi eq, %arg1, %c0_i32 : i32
    %1 = arith.extui %0 : i1 to i32
    %c0_i32_0 = arith.constant 0 : i32
    %2 = arith.cmpi ne, %1, %c0_i32_0 : i32
    scf.if %2 {
      %cst_10 = arith.constant 0.000000e+00 : f32
      %15 = vector.broadcast %cst_10 : f32 to vector<128x4xf32>
      %c0_11 = arith.constant 0 : index
      %c0_12 = arith.constant 0 : index
      %16 = vector.load %arg7[%c0_11, %c0_12] : memref<128x4xf32, #tpu.memory_space<vmem>>, vector<128x4xf32>
      tpu.vector_store %arg7[%c0_11, %c0_12], %15 {strides = array<i32>} : memref<128x4xf32, #tpu.memory_space<vmem>>, vector<128x4xf32>,
    } else {
    }
    %c0 = arith.constant 0 : index
    %c0_1 = arith.constant 0 : index
    %3 = vector.load %arg7[%c0, %c0_1] : memref<128x4xf32, #tpu.memory_space<vmem>>, vector<128x4xf32>
    %c0_2 = arith.constant 0 : index
    %c0_3 = arith.constant 0 : index
    %c0_4 = arith.constant 0 : index
    %4 = vector.load %arg2[%c0_2, %c0_3, %c0_4] : memref<1x128x4xf32, #tpu.memory_space<vmem>>, vector<1x128x4xf32>
    %5 = vector.shape_cast %4 : vector<1x128x4xf32> to vector<128x4xf32>
    %6 = arith.index_cast %arg1 : i32 to index
    %c0_5 = arith.constant 0 : index
    %c0_6 = arith.constant 0 : index
    %7 = vector.load %arg3[%6, %c0_5, %c0_6] : memref<9x4x4xf32, #tpu.memory_space<vmem>>, vector<1x4x4xf32>
    %8 = vector.shape_cast %7 : vector<1x4x4xf32> to vector<4x4xf32>
    %cst = arith.constant dense<0.000000e+00> : vector<128x4xf32>
    %9 = tpu.matmul %5, %8, %cst {dimension_numbers = #tpu.dot_dimension_numbers<[1], [0], [0], [1], [0, 0, 1, 1], [], []>} : vector<128x4xf32>, vector<4x4xf32>, vector<128x4xf32> -> vector<128x4xf32>
    %10 = arith.addf %3, %9 : vector<128x4xf32>
    %c0_7 = arith.constant 0 : index
    %c0_8 = arith.constant 0 : index
    %11 = vector.load %arg7[%c0_7, %c0_8] : memref<128x4xf32, #tpu.memory_space<vmem>>, vector<128x4xf32>
    tpu.vector_store %arg7[%c0_7, %c0_8], %10 {strides = array<i32>} : memref<128x4xf32, #tpu.memory_space<vmem>>, vector<128x4xf32>,
    %c8_i32 = arith.constant 8 : i32
    %12 = arith.cmpi eq, %arg1, %c8_i32 : i32
    %13 = arith.extui %12 : i1 to i32
    %c0_i32_9 = arith.constant 0 : i32
    %14 = arith.cmpi ne, %13, %c0_i32_9 : i32
    scf.if %14 {
      %c0_10 = arith.constant 0 : index
      %c0_11 = arith.constant 0 : index
      %15 = vector.load %arg7[%c0_10, %c0_11] : memref<128x4xf32, #tpu.memory_space<vmem>>, vector<128x4xf32>
      %c0_12 = arith.constant 0 : index
      %c0_13 = arith.constant 0 : index
      %16 = vector.load %arg4[%c0_12, %c0_13] : memref<128x4xf32, #tpu.memory_space<vmem>>, vector<128x4xf32>
      %17 = arith.addf %15, %16 : vector<128x4xf32>
      %c0_14 = arith.constant 0 : index
      %c0_15 = arith.constant 0 : index
      %18 = vector.load %arg5[%c0_14, %c0_15] : memref<1x4xf32, #tpu.memory_space<vmem>>, vector<1x4xf32>
      %19 = vector.broadcast %18 : vector<1x4xf32> to vector<128x4xf32>
      %20 = arith.mulf %17, %19 : vector<128x4xf32>
      %c0_16 = arith.constant 0 : index
      %c0_17 = arith.constant 0 : index
      %21 = vector.load %arg6[%c0_16, %c0_17] : memref<1x4xf32, #tpu.memory_space<vmem>>, vector<1x4xf32>
      %22 = vector.broadcast %21 : vector<1x4xf32> to vector<128x4xf32>
      %23 = arith.addf %20, %22 : vector<128x4xf32>
      %cst_18 = arith.constant 0.000000e+00 : f32
      %24 = vector.broadcast %cst_18 : f32 to vector<128x4xf32>
      %25 = arith.maximumf %23, %24 : vector<128x4xf32>
      %c0_19 = arith.constant 0 : index
      %c0_20 = arith.constant 0 : index
      %26 = vector.load %arg7[%c0_19, %c0_20] : memref<128x4xf32, #tpu.memory_space<vmem>>, vector<128x4xf32>
      tpu.vector_store %arg7[%c0_19, %c0_20], %25 {strides = array<i32>} : memref<128x4xf32, #tpu.memory_space<vmem>>, vector<128x4xf32>,
      %27 = vector.shape_cast %25 : vector<128x4xf32> to vector<8x16x4xf32>
      %cst_21 = arith.constant dense<0.000000e+00> : vector<8x4xf32>
      %28 = vector.multi_reduction <add>, %27, %cst_21 [1] : vector<8x16x4xf32> to vector<8x4xf32>
      %cst_22 = arith.constant 6.250000e-02 : f32
      %29 = vector.broadcast %cst_22 : f32 to vector<8x4xf32>
      %30 = arith.mulf %28, %29 : vector<8x4xf32>
      %c0_23 = arith.constant 0 : index
      %c0_24 = arith.constant 0 : index
      %31 = vector.load %arg8[%c0_23, %c0_24] : memref<8x4xf32, #tpu.memory_space<vmem>>, vector<8x4xf32>
      tpu.vector_store %arg8[%c0_23, %c0_24], %30 {strides = array<i32>} : memref<8x4xf32, #tpu.memory_space<vmem>>, vector<8x4xf32>,
    } else {
    }
    return
  }
  func.func @transform_0(%arg0: i32, %arg1: i32) -> (i32, i32, i32) {
    %c0_i32 = arith.constant 0 : i32
    %c0_i32_0 = arith.constant 0 : i32
    return %arg1, %arg0, %c0_i32 : i32, i32, i32
  }
  func.func @transform_1(%arg0: i32, %arg1: i32) -> (i32, i32, i32) {
    %c0_i32 = arith.constant 0 : i32
    %c0_i32_0 = arith.constant 0 : i32
    %c0_i32_1 = arith.constant 0 : i32
    %c0_i32_2 = arith.constant 0 : i32
    return %c0_i32, %c0_i32_0, %c0_i32_1 : i32, i32, i32
  }
  func.func @transform_2(%arg0: i32, %arg1: i32) -> (i32, i32) {
    %c0_i32 = arith.constant 0 : i32
    %c0_i32_0 = arith.constant 0 : i32
    return %arg0, %c0_i32 : i32, i32
  }
  func.func @transform_3(%arg0: i32, %arg1: i32) -> (i32, i32) {
    %c0_i32 = arith.constant 0 : i32
    %c0_i32_0 = arith.constant 0 : i32
    %c0_i32_1 = arith.constant 0 : i32
    return %c0_i32, %c0_i32_0 : i32, i32
  }
  func.func @transform_4(%arg0: i32, %arg1: i32) -> (i32, i32) {
    %c0_i32 = arith.constant 0 : i32
    %c0_i32_0 = arith.constant 0 : i32
    %c0_i32_1 = arith.constant 0 : i32
    return %c0_i32, %c0_i32_0 : i32, i32
  }
  func.func @transform_5(%arg0: i32, %arg1: i32) -> (i32, i32) {
    %c0_i32 = arith.constant 0 : i32
    %c0_i32_0 = arith.constant 0 : i32
    return %arg0, %c0_i32 : i32, i32
  }
  func.func @transform_6(%arg0: i32, %arg1: i32) -> (i32, i32) {
    %c0_i32 = arith.constant 0 : i32
    %c0_i32_0 = arith.constant 0 : i32
    return %arg0, %c0_i32 : i32, i32
  }
}

module attributes {stable_mosaic.version = 11 : i64} {
  func.func @_linear_kernel(%arg0: i32, %arg1: memref<2x16xf32, #tpu.memory_space<vmem>>, %arg2: memref<16x10xf32, #tpu.memory_space<vmem>>, %arg3: memref<1x10xf32, #tpu.memory_space<vmem>>, %arg4: memref<2x10xf32, #tpu.memory_space<vmem>>) attributes {dimension_semantics = [#tpu.dimension_semantics<arbitrary>], iteration_bounds = array<i64: 1>, scalar_prefetch = 0 : i64, scratch_operands = 0 : i64, tpu.core_type = #tpu.core_type<tc>, window_params = [{pipeline_mode = #tpu.pipeline_mode<synchronous>, transform_indices = @transform_0, window_bounds = array<i64: 2, 16>}, {pipeline_mode = #tpu.pipeline_mode<synchronous>, transform_indices = @transform_1, window_bounds = array<i64: 16, 10>}, {pipeline_mode = #tpu.pipeline_mode<synchronous>, transform_indices = @transform_2, window_bounds = array<i64: 1, 10>}, {pipeline_mode = #tpu.pipeline_mode<synchronous>, transform_indices = @transform_3, window_bounds = array<i64: 2, 10>}]} {
    %c0 = arith.constant 0 : index
    %c0_0 = arith.constant 0 : index
    %0 = vector.load %arg1[%c0, %c0_0] : memref<2x16xf32, #tpu.memory_space<vmem>>, vector<2x16xf32>
    %c0_1 = arith.constant 0 : index
    %c0_2 = arith.constant 0 : index
    %1 = vector.load %arg2[%c0_1, %c0_2] : memref<16x10xf32, #tpu.memory_space<vmem>>, vector<16x10xf32>
    %cst = arith.constant dense<0.000000e+00> : vector<2x10xf32>
    %2 = tpu.matmul %0, %1, %cst {dimension_numbers = #tpu.dot_dimension_numbers<[1], [0], [0], [1], [0, 0, 1, 1], [], []>} : vector<2x16xf32>, vector<16x10xf32>, vector<2x10xf32> -> vector<2x10xf32>
    %c0_3 = arith.constant 0 : index
    %c0_4 = arith.constant 0 : index
    %3 = vector.load %arg3[%c0_3, %c0_4] : memref<1x10xf32, #tpu.memory_space<vmem>>, vector<1x10xf32>
    %4 = vector.broadcast %3 : vector<1x10xf32> to vector<2x10xf32>
    %5 = arith.addf %2, %4 : vector<2x10xf32>
    %c0_5 = arith.constant 0 : index
    %c0_6 = arith.constant 0 : index
    %6 = vector.load %arg4[%c0_5, %c0_6] : memref<2x10xf32, #tpu.memory_space<vmem>>, vector<2x10xf32>
    tpu.vector_store %arg4[%c0_5, %c0_6], %5 {strides = array<i32>} : memref<2x10xf32, #tpu.memory_space<vmem>>, vector<2x10xf32>,
    return
  }
  func.func @transform_0(%arg0: i32) -> (i32, i32) {
    %c0_i32 = arith.constant 0 : i32
    %c0_i32_0 = arith.constant 0 : i32
    %c0_i32_1 = arith.constant 0 : i32
    return %c0_i32, %c0_i32_0 : i32, i32
  }
  func.func @transform_1(%arg0: i32) -> (i32, i32) {
    %c0_i32 = arith.constant 0 : i32
    %c0_i32_0 = arith.constant 0 : i32
    %c0_i32_1 = arith.constant 0 : i32
    return %c0_i32, %c0_i32_0 : i32, i32
  }
  func.func @transform_2(%arg0: i32) -> (i32, i32) {
    %c0_i32 = arith.constant 0 : i32
    %c0_i32_0 = arith.constant 0 : i32
    %c0_i32_1 = arith.constant 0 : i32
    return %c0_i32, %c0_i32_0 : i32, i32
  }
  func.func @transform_3(%arg0: i32) -> (i32, i32) {
    %c0_i32 = arith.constant 0 : i32
    %c0_i32_0 = arith.constant 0 : i32
    %c0_i32_1 = arith.constant 0 : i32
    return %c0_i32, %c0_i32_0 : i32, i32
  }
}

module attributes {stable_mosaic.version = 11 : i64} {
  func.func @_mask_pool_kernel(%arg0: i32, %arg1: memref<128x4xf32, #tpu.memory_space<vmem>>, %arg2: memref<8x4xf32, #tpu.memory_space<vmem>>, %arg3: memref<128x4xf32, #tpu.memory_space<vmem>>, %arg4: memref<8x4xf32, #tpu.memory_space<vmem>>) attributes {dimension_semantics = [#tpu.dimension_semantics<parallel>], iteration_bounds = array<i64: 1>, scalar_prefetch = 0 : i64, scratch_operands = 0 : i64, tpu.core_type = #tpu.core_type<tc>, window_params = [{transform_indices = @transform_0, window_bounds = array<i64: 128, 4>}, {transform_indices = @transform_1, window_bounds = array<i64: 8, 4>}, {transform_indices = @transform_2, window_bounds = array<i64: 128, 4>}, {transform_indices = @transform_3, window_bounds = array<i64: 8, 4>}]} {
    %c0 = arith.constant 0 : index
    %c0_0 = arith.constant 0 : index
    %0 = vector.load %arg1[%c0, %c0_0] : memref<128x4xf32, #tpu.memory_space<vmem>>, vector<128x4xf32>
    %1 = vector.shape_cast %0 : vector<128x4xf32> to vector<8x16x4xf32>
    %c0_1 = arith.constant 0 : index
    %c0_2 = arith.constant 0 : index
    %2 = vector.load %arg2[%c0_1, %c0_2] : memref<8x4xf32, #tpu.memory_space<vmem>>, vector<8x4xf32>
    %3 = vector.shape_cast %2 : vector<8x4xf32> to vector<8x1x4xf32>
    %4 = vector.broadcast %3 : vector<8x1x4xf32> to vector<8x16x4xf32>
    %5 = arith.mulf %1, %4 : vector<8x16x4xf32>
    %6 = vector.shape_cast %5 : vector<8x16x4xf32> to vector<128x4xf32>
    %c0_3 = arith.constant 0 : index
    %c0_4 = arith.constant 0 : index
    %7 = vector.load %arg3[%c0_3, %c0_4] : memref<128x4xf32, #tpu.memory_space<vmem>>, vector<128x4xf32>
    tpu.vector_store %arg3[%c0_3, %c0_4], %6 {strides = array<i32>} : memref<128x4xf32, #tpu.memory_space<vmem>>, vector<128x4xf32>,
    %cst = arith.constant dense<0.000000e+00> : vector<8x4xf32>
    %8 = vector.multi_reduction <add>, %5, %cst [1] : vector<8x16x4xf32> to vector<8x4xf32>
    %cst_5 = arith.constant 6.250000e-02 : f32
    %9 = vector.broadcast %cst_5 : f32 to vector<8x4xf32>
    %10 = arith.mulf %8, %9 : vector<8x4xf32>
    %c0_6 = arith.constant 0 : index
    %c0_7 = arith.constant 0 : index
    %11 = vector.load %arg4[%c0_6, %c0_7] : memref<8x4xf32, #tpu.memory_space<vmem>>, vector<8x4xf32>
    tpu.vector_store %arg4[%c0_6, %c0_7], %10 {strides = array<i32>} : memref<8x4xf32, #tpu.memory_space<vmem>>, vector<8x4xf32>,
    return
  }
  func.func @transform_0(%arg0: i32) -> (i32, i32) {
    %c0_i32 = arith.constant 0 : i32
    %c0_i32_0 = arith.constant 0 : i32
    return %arg0, %c0_i32 : i32, i32
  }
  func.func @transform_1(%arg0: i32) -> (i32, i32) {
    %c0_i32 = arith.constant 0 : i32
    %c0_i32_0 = arith.constant 0 : i32
    return %arg0, %c0_i32 : i32, i32
  }
  func.func @transform_2(%arg0: i32) -> (i32, i32) {
    %c0_i32 = arith.constant 0 : i32
    %c0_i32_0 = arith.constant 0 : i32
    return %arg0, %c0_i32 : i32, i32
  }
  func.func @transform_3(%arg0: i32) -> (i32, i32) {
    %c0_i32 = arith.constant 0 : i32
    %c0_i32_0 = arith.constant 0 : i32
    return %arg0, %c0_i32 : i32, i32
  }
}

module attributes {stable_mosaic.version = 11 : i64} {
  func.func @_linear_kernel(%arg0: i32, %arg1: memref<2x16xf32, #tpu.memory_space<vmem>>, %arg2: memref<16x10xf32, #tpu.memory_space<vmem>>, %arg3: memref<1x10xf32, #tpu.memory_space<vmem>>, %arg4: memref<2x10xf32, #tpu.memory_space<vmem>>) attributes {dimension_semantics = [#tpu.dimension_semantics<arbitrary>], iteration_bounds = array<i64: 1>, scalar_prefetch = 0 : i64, scratch_operands = 0 : i64, tpu.core_type = #tpu.core_type<tc>, window_params = [{pipeline_mode = #tpu.pipeline_mode<synchronous>, transform_indices = @transform_0, window_bounds = array<i64: 2, 16>}, {pipeline_mode = #tpu.pipeline_mode<synchronous>, transform_indices = @transform_1, window_bounds = array<i64: 16, 10>}, {pipeline_mode = #tpu.pipeline_mode<synchronous>, transform_indices = @transform_2, window_bounds = array<i64: 1, 10>}, {pipeline_mode = #tpu.pipeline_mode<synchronous>, transform_indices = @transform_3, window_bounds = array<i64: 2, 10>}]} {
    %c0 = arith.constant 0 : index
    %c0_0 = arith.constant 0 : index
    %0 = vector.load %arg1[%c0, %c0_0] : memref<2x16xf32, #tpu.memory_space<vmem>>, vector<2x16xf32>
    %c0_1 = arith.constant 0 : index
    %c0_2 = arith.constant 0 : index
    %1 = vector.load %arg2[%c0_1, %c0_2] : memref<16x10xf32, #tpu.memory_space<vmem>>, vector<16x10xf32>
    %cst = arith.constant dense<0.000000e+00> : vector<2x10xf32>
    %2 = tpu.matmul %0, %1, %cst {dimension_numbers = #tpu.dot_dimension_numbers<[1], [0], [0], [1], [0, 0, 1, 1], [], []>} : vector<2x16xf32>, vector<16x10xf32>, vector<2x10xf32> -> vector<2x10xf32>
    %c0_3 = arith.constant 0 : index
    %c0_4 = arith.constant 0 : index
    %3 = vector.load %arg3[%c0_3, %c0_4] : memref<1x10xf32, #tpu.memory_space<vmem>>, vector<1x10xf32>
    %4 = vector.broadcast %3 : vector<1x10xf32> to vector<2x10xf32>
    %5 = arith.addf %2, %4 : vector<2x10xf32>
    %c0_5 = arith.constant 0 : index
    %c0_6 = arith.constant 0 : index
    %6 = vector.load %arg4[%c0_5, %c0_6] : memref<2x10xf32, #tpu.memory_space<vmem>>, vector<2x10xf32>
    tpu.vector_store %arg4[%c0_5, %c0_6], %5 {strides = array<i32>} : memref<2x10xf32, #tpu.memory_space<vmem>>, vector<2x10xf32>,
    return
  }
  func.func @transform_0(%arg0: i32) -> (i32, i32) {
    %c0_i32 = arith.constant 0 : i32
    %c0_i32_0 = arith.constant 0 : i32
    %c0_i32_1 = arith.constant 0 : i32
    return %c0_i32, %c0_i32_0 : i32, i32
  }
  func.func @transform_1(%arg0: i32) -> (i32, i32) {
    %c0_i32 = arith.constant 0 : i32
    %c0_i32_0 = arith.constant 0 : i32
    %c0_i32_1 = arith.constant 0 : i32
    return %c0_i32, %c0_i32_0 : i32, i32
  }
  func.func @transform_2(%arg0: i32) -> (i32, i32) {
    %c0_i32 = arith.constant 0 : i32
    %c0_i32_0 = arith.constant 0 : i32
    %c0_i32_1 = arith.constant 0 : i32
    return %c0_i32, %c0_i32_0 : i32, i32
  }
  func.func @transform_3(%arg0: i32) -> (i32, i32) {
    %c0_i32 = arith.constant 0 : i32
    %c0_i32_0 = arith.constant 0 : i32
    %c0_i32_1 = arith.constant 0 : i32
    return %c0_i32, %c0_i32_0 : i32, i32
  }
}

</mosaic_0001>

<llo_original>
// kernel: self_preact_block_forward.7
$region0: #{self_preact_block_forward.7}
  #allocation0 [shape = 'u32[]', space=smem, size = 0x4, offset = 0x4, fixed_abs, tag = 'smem constant byte address 0x4 - core index']
  #allocation1 [shape = 'u32[144,128]{1,0:T(1,128)}', space=vmem, size = 0x12000, scoped, tag = 'internal scratch']
  %s0 = inlined_call_operand.vmem [shape: f32[2,16], index: 0, kind: input, shape index: {}]
  %s1 = inlined_call_operand.vmem [shape: f32[16,10], index: 1, kind: input, shape index: {}]
  %s2 = inlined_call_operand.vmem [shape: f32[1,10], index: 2, kind: input, shape index: {}]
  %s3 = inlined_call_operand.vmem [shape: f32[2,10], index: 3, kind: output, shape index: {}]
  %s4 = sld [smem:[#allocation0]]
  $region22: #{self_preact_block_forward.7} parent=0
    _
  %s6 = ssub.s32 1, %s4
  %s7 = scalar_select 0, %s6, %s4
  // Predicated region
  $region2: #{self_preact_block_forward.7} parent=0 // pred_check
    _
  $region3: #{self_preact_block_forward.7} parent=0 // pred_check_branch
    %9 = sbr.rel (0) target = $region5
  $region4: #{self_preact_block_forward.7} parent=0 // pred_region
    _
  $region5: #{self_preact_block_forward.7} parent=0 // pred_fallthru
    _
  // Predicated region
  $region6: #{self_preact_block_forward.7} parent=0 // pred_check
    _
  $region7: #{self_preact_block_forward.7} parent=0 // pred_check_branch
    %11 = sbr.rel (0) target = $region9
  $region8: #{self_preact_block_forward.7} parent=0 // pred_region
    _
  $region9: #{self_preact_block_forward.7} parent=0 // pred_fallthru
    _
  // Predicated region
  $region10: #{self_preact_block_forward.7} parent=0 // pred_check
    _
  $region11: #{self_preact_block_forward.7} parent=0 // pred_check_branch
    %13 = sbr.rel (0) target = $region13
  $region12: #{self_preact_block_forward.7} parent=0 // pred_region
    _
  $region13: #{self_preact_block_forward.7} parent=0 // pred_fallthru
    _
  %v14 = vld [vmem:[%s0] sm:$0x3]
  %v15 = vld [vmem:[%s1] sm:$0xff]
  %v16 = vld [vmem:[%s1 + $0x8] sm:$0xff]
  %v17 = vld [vmem:[%s2] sm:$0x1]
  %v19 = vlaneseq
  %v20 = vshrl.u32 %v19, 7
  %v21 = vsub.s32 0, %v20
  %v22 = vrot.slane %v17, %v21
  %vm24 = vcmask 130048
  %v26 = vsel %vm24, %v14, 0
  %28 = vmatprep.subr.mxu0 0.0
  %29 = vmatpush1.msra.mxu0 0.0
  %30 = vmatprep.subr.mxu0 0.0
  %31 = vmatpush1.msra.mxu0 0.0
  %32 = vmatprep.subr.mxu0 0.0
  %33 = vmatpush1.msra.mxu0 0.0
  %34 = vmatprep.subr.mxu0 0.0
  %35 = vmatpush1.msra.mxu0 0.0
  %36 = vmatprep.subr.mxu0 0.0
  %37 = vmatpush1.msra.mxu0 0.0
  %38 = vmatprep.subr.mxu0 0.0
  %39 = vmatpush1.msra.mxu0 0.0
  %40 = vmatprep.subr.mxu0 0.0
  %41 = vmatpush1.msra.mxu0 0.0
  %42 = vmatprep.subr.mxu0 0.0
  %43 = vmatpush1.msra.mxu0 0.0
  %44 = vmatprep.subr.mxu0 0.0
  %45 = vmatpush1.msra.mxu0 0.0
  %46 = vmatprep.subr.mxu0 0.0
  %47 = vmatpush1.msra.mxu0 0.0
  %48 = vmatprep.subr.mxu0 0.0
  %49 = vmatpush1.msra.mxu0 0.0
  %50 = vmatprep.subr.mxu0 0.0
  %51 = vmatpush1.msra.mxu0 0.0
  %52 = vmatprep.subr.mxu0 0.0
  %53 = vmatpush1.msra.mxu0 0.0
  %54 = vmatprep.subr.mxu0 0.0
  %55 = vmatpush1.msra.mxu0 0.0
  %56 = vmatprep.subr.mxu0 0.0
  %57 = vmatpush1.msra.mxu0 %v16
  %58 = vmatprep.subr.mxu0 0.0
  %59 = vmatpush1.msra.mxu0 %v15
  %60 = vmatprep.subr.mxu0 0.0
  %61 = vmatpush2.msra.mxu0 0.0
  %62 = vmatprep.subr.mxu0 0.0
  %63 = vmatpush2.msra.mxu0 0.0
  %64 = vmatprep.subr.mxu0 0.0
  %65 = vmatpush2.msra.mxu0 0.0
  %66 = vmatprep.subr.mxu0 0.0
  %67 = vmatpush2.msra.mxu0 0.0
  %68 = vmatprep.subr.mxu0 0.0
  %69 = vmatpush2.msra.mxu0 0.0
  %70 = vmatprep.subr.mxu0 0.0
  %71 = vmatpush2.msra.mxu0 0.0
  %72 = vmatprep.subr.mxu0 0.0
  %73 = vmatpush2.msra.mxu0 0.0
  %74 = vmatprep.subr.mxu0 0.0
  %75 = vmatpush2.msra.mxu0 0.0
  %76 = vmatprep.subr.mxu0 0.0
  %77 = vmatpush2.msra.mxu0 0.0
  %78 = vmatprep.subr.mxu0 0.0
  %79 = vmatpush2.msra.mxu0 0.0
  %80 = vmatprep.subr.mxu0 0.0
  %81 = vmatpush2.msra.mxu0 0.0
  %82 = vmatprep.subr.mxu0 0.0
  %83 = vmatpush2.msra.mxu0 0.0
  %84 = vmatprep.subr.mxu0 0.0
  %85 = vmatpush2.msra.mxu0 0.0
  %86 = vmatprep.subr.mxu0 0.0
  %87 = vmatpush2.msra.mxu0 0.0
  %88 = vmatprep.subr.mxu0 0.0
  %89 = vmatpush2.msra.mxu0 0.0
  %90 = vmatprep.subr.mxu0 0.0
  %91 = vmatpush2.msra.mxu0 0.0
  %92 = vmatprep.mubr.f32.mxu0 0.0
  %93 = vmatmul.mubr.f32.gmra.mxu0 %v26
  %v94 = vpop.f32.mrf.mxu0
  %v95 = vadd.f32 %v22, %v94
  %v96 = vpop.f32.mrf.mxu0
  %97 = vdwg.mxu0
  %vm98 = vcmask 74752
  %99 = vst.msk [vmem:[%s3] sm:$0x3] %vm98, %v95
  // Predicated region
  $region14: #{self_preact_block_forward.7} parent=0 // pred_check
    _
  $region15: #{self_preact_block_forward.7} parent=0 // pred_check_branch
    %101 = sbr.rel (0) target = $region17
  $region16: #{self_preact_block_forward.7} parent=0 // pred_region
    _
  $region17: #{self_preact_block_forward.7} parent=0 // pred_fallthru
    _
  // Predicated region
  $region18: #{self_preact_block_forward.7} parent=0 // pred_check
    _
  $region19: #{self_preact_block_forward.7} parent=0 // pred_check_branch
    %103 = sbr.rel (0) target = $region21
  $region20: #{self_preact_block_forward.7} parent=0 // pred_region
    _
  $region21: #{self_preact_block_forward.7} parent=0 // pred_fallthru
    _

// kernel: self_preact_block_forward.6
$region0: #{self_preact_block_forward.6}
  #allocation0 [shape = 'u32[]', space=smem, size = 0x4, offset = 0x4, fixed_abs, tag = 'smem constant byte address 0x4 - core index']
  #allocation1 [shape = 'u32[144,128]{1,0:T(1,128)}', space=vmem, size = 0x12000, scoped, tag = 'internal scratch']
  %s0 = inlined_call_operand.vmem [shape: f32[9,128,4], index: 0, kind: input, shape index: {}]
  %s1 = inlined_call_operand.vmem [shape: f32[9,4,4], index: 1, kind: input, shape index: {}]
  %s2 = inlined_call_operand.vmem [shape: f32[128,4], index: 2, kind: input, shape index: {}]
  %s3 = inlined_call_operand.vmem [shape: f32[1,4], index: 3, kind: input, shape index: {}]
  %s4 = inlined_call_operand.vmem [shape: f32[1,4], index: 4, kind: input, shape index: {}]
  %s5 = inlined_call_operand.vmem [shape: f32[128,4], index: 5, kind: output, shape index: {0}]
  %s6 = inlined_call_operand.vmem [shape: f32[8,4], index: 6, kind: output, shape index: {1}]
  %7 = xla_tuple %s5, %s6
  %s8 = sld [smem:[#allocation0]]
  $region69: #{self_preact_block_forward.6} parent=0
    _
  %s10 = ssub.s32 1, %s8
  %s11 = scalar_select 0, %s10, %s8
  loop: start=0, step=1, limit=11
  $region2: #{self_preact_block_forward.6} parent=0 // loop_pre_header
    _
  $region3: #{self_preact_block_forward.6} parent=0 // loop_header
    %s13 = sphi 0, %s17
    %p14 = scmp.ge.s32.totalorder %s13, 11
    %s20 = sphi 0, %s32
    %s21 = sphi 0, %s28
    %s22 = sphi 0, %s20
    %s23 = sphi 0, %s21
    %s24 = sphi 0, %s22
    %s25 = sphi 0, %s23
    %s37 = sphi 0, %s39
    %s40 = sphi 0, %s37
    %s41 = sphi 0, %s40
    %s57 = sphi 0, %s41
    %s61 = sphi 0, %s61
    %s63 = sphi 0, %s61
    %s64 = sphi 0, %s63
    %s78 = sphi 0, %s64
    %s84 = sphi 0, %s86
    %s87 = sphi 0, %s84
    %s88 = sphi 0, %s87
    %s104 = sphi 0, %s88
    %s108 = sphi 0, %s108
    %s110 = sphi 0, %s108
    %s111 = sphi 0, %s110
    %s125 = sphi 0, %s111
    %s129 = sphi 0, %s129
    %s131 = sphi 0, %s129
    %s132 = sphi 0, %s131
    %s146 = sphi 0, %s132
    %s152 = sphi 0, %s154
    %s155 = sphi 0, %s152
    %s156 = sphi 0, %s155
    %s172 = sphi 0, %s156
    %s178 = sphi 0, %s180
    %s181 = sphi 0, %s178
    %s182 = sphi 0, %s181
    %s198 = sphi 0, %s182
  $region4: #{self_preact_block_forward.6} parent=0 // loop_header_branch
    %16 = sbr.rel (%p14) target = $region8
  $region5: #{self_preact_block_forward.6} parent=0 // loop_body
    %s18 = ssub.s32 %s13, 1
    %s19 = ssub.s32 %s13, 2
    %s26 = sadd.s32 1, %s21
    %p27 = scmp.ge.s32.totalorder %s26, 9
    %s28 = scalar_select %p27, 0, %s26
    %s29 = sadd.s32 1, %s20
    %s30 = scalar_select %p27, %s29, %s20
    %p31 = scmp.ge.s32.totalorder %s30, 1
    %s32 = scalar_select %p31, 0, %s30
    %s33 = ssub.s32 %s21, %s28
    %s34 = ssub.s32 %s20, %s32
    %s35 = sor.u32 %s33, %s34
    %p36 = scmp.eq.s32.totalorder %s35, 0
    %s38 = sadd.s32 %s37, 1
    %s39 = scalar_select %p36, %s37, %s38
    %p42 = pneg %p36
    %p43 = scmp.eq.s32.totalorder %s13, 8
    %p44 = por %p42, %p43
    %p45 = scmp.ne.s32.totalorder %s37, %s40
    %p46 = scmp.eq.s32.totalorder %s13, 0
    %p47 = por %p45, %p46
    %p48 = scmp.ne.s32.totalorder %s37, %s40
    %p49 = scmp.eq.s32.totalorder %s18, 8
    %p50 = por %p48, %p49
    %p51 = scmp.ne.s32.totalorder %s40, %s41
    %p52 = scmp.eq.s32.totalorder %s18, 0
    %p53 = por %p51, %p52
    %p54 = scmp.ne.s32.totalorder %s40, %s41
    %p55 = scmp.eq.s32.totalorder %s19, 8
    %p56 = por %p54, %p55
    %p58 = scmp.ne.s32.totalorder %s41, %s57
    %p59 = scmp.eq.s32.totalorder %s19, 0
    %p60 = por %p58, %p59
    %s62 = sadd.s32 %s61, 1
    %p65 = scmp.eq.s32.totalorder %s13, 8
    %p66 = scmp.ne.s32.totalorder %s61, %s63
    %p67 = scmp.eq.s32.totalorder %s13, 0
    %p68 = por %p66, %p67
    %p69 = scmp.ne.s32.totalorder %s61, %s63
    %p70 = scmp.eq.s32.totalorder %s18, 8
    %p71 = por %p69, %p70
    %p72 = scmp.ne.s32.totalorder %s63, %s64
    %p73 = scmp.eq.s32.totalorder %s18, 0
    %p74 = por %p72, %p73
    %p75 = scmp.ne.s32.totalorder %s63, %s64
    %p76 = scmp.eq.s32.totalorder %s19, 8
    %p77 = por %p75, %p76
    %p79 = scmp.ne.s32.totalorder %s64, %s78
    %p80 = scmp.eq.s32.totalorder %s19, 0
    %p81 = por %p79, %p80
    %s82 = ssub.s32 %s20, %s32
    %p83 = scmp.eq.s32.totalorder %s82, 0
    %s85 = sadd.s32 %s84, 1
    %s86 = scalar_select %p83, %s84, %s85
    %p89 = pneg %p83
    %p90 = scmp.eq.s32.totalorder %s13, 8
    %p91 = por %p89, %p90
    %p92 = scmp.ne.s32.totalorder %s84, %s87
    %p93 = scmp.eq.s32.totalorder %s13, 0
    %p94 = por %p92, %p93
    %p95 = scmp.ne.s32.totalorder %s84, %s87
    %p96 = scmp.eq.s32.totalorder %s18, 8
    %p97 = por %p95, %p96
    %p98 = scmp.ne.s32.totalorder %s87, %s88
    %p99 = scmp.eq.s32.totalorder %s18, 0
    %p100 = por %p98, %p99
    %p101 = scmp.ne.s32.totalorder %s87, %s88
    %p102 = scmp.eq.s32.totalorder %s19, 8
    %p103 = por %p101, %p102
    %p105 = scmp.ne.s32.totalorder %s88, %s104
    %p106 = scmp.eq.s32.totalorder %s19, 0
    %p107 = por %p105, %p106
    %s109 = sadd.s32 %s108, 1
    %p112 = scmp.eq.s32.totalorder %s13, 8
    %p113 = scmp.ne.s32.totalorder %s108, %s110
    %p114 = scmp.eq.s32.totalorder %s13, 0
    %p115 = por %p113, %p114
    %p116 = scmp.ne.s32.totalorder %s108, %s110
    %p117 = scmp.eq.s32.totalorder %s18, 8
    %p118 = por %p116, %p117
    %p119 = scmp.ne.s32.totalorder %s110, %s111
    %p120 = scmp.eq.s32.totalorder %s18, 0
    %p121 = por %p119, %p120
    %p122 = scmp.ne.s32.totalorder %s110, %s111
    %p123 = scmp.eq.s32.totalorder %s19, 8
    %p124 = por %p122, %p123
    %p126 = scmp.ne.s32.totalorder %s111, %s125
    %p127 = scmp.eq.s32.totalorder %s19, 0
    %p128 = por %p126, %p127
    %s130 = sadd.s32 %s129, 1
    %p133 = scmp.eq.s32.totalorder %s13, 8
    %p134 = scmp.ne.s32.totalorder %s129, %s131
    %p135 = scmp.eq.s32.totalorder %s13, 0
    %p136 = por %p134, %p135
    %p137 = scmp.ne.s32.totalorder %s129, %s131
    %p138 = scmp.eq.s32.totalorder %s18, 8
    %p139 = por %p137, %p138
    %p140 = scmp.ne.s32.totalorder %s131, %s132
    %p141 = scmp.eq.s32.totalorder %s18, 0
    %p142 = por %p140, %p141
    %p143 = scmp.ne.s32.totalorder %s131, %s132
    %p144 = scmp.eq.s32.totalorder %s19, 8
    %p145 = por %p143, %p144
    %p147 = scmp.ne.s32.totalorder %s132, %s146
    %p148 = scmp.eq.s32.totalorder %s19, 0
    %p149 = por %p147, %p148
    %s150 = ssub.s32 %s20, %s32
    %p151 = scmp.eq.s32.totalorder %s150, 0
    %s153 = sadd.s32 %s152, 1
    %s154 = scalar_select %p151, %s152, %s153
    %p157 = pneg %p151
    %p158 = scmp.eq.s32.totalorder %s13, 8
    %p159 = por %p157, %p158
    %p160 = scmp.ne.s32.totalorder %s152, %s155
    %p161 = scmp.eq.s32.totalorder %s13, 0
    %p162 = por %p160, %p161
    %p163 = scmp.ne.s32.totalorder %s152, %s155
    %p164 = scmp.eq.s32.totalorder %s18, 8
    %p165 = por %p163, %p164
    %p166 = scmp.ne.s32.totalorder %s155, %s156
    %p167 = scmp.eq.s32.totalorder %s18, 0
    %p168 = por %p166, %p167
    %p169 = scmp.ne.s32.totalorder %s155, %s156
    %p170 = scmp.eq.s32.totalorder %s19, 8
    %p171 = por %p169, %p170
    %p173 = scmp.ne.s32.totalorder %s156, %s172
    %p174 = scmp.eq.s32.totalorder %s19, 0
    %p175 = por %p173, %p174
    %s176 = ssub.s32 %s20, %s32
    %p177 = scmp.eq.s32.totalorder %s176, 0
    %s179 = sadd.s32 %s178, 1
    %s180 = scalar_select %p177, %s178, %s179
    %p183 = pneg %p177
    %p184 = scmp.eq.s32.totalorder %s13, 8
    %p185 = por %p183, %p184
    %p186 = scmp.ne.s32.totalorder %s178, %s181
    %p187 = scmp.eq.s32.totalorder %s13, 0
    %p188 = por %p186, %p187
    %p189 = scmp.ne.s32.totalorder %s178, %s181
    %p190 = scmp.eq.s32.totalorder %s18, 8
    %p191 = por %p189, %p190
    %p192 = scmp.ne.s32.totalorder %s181, %s182
    %p193 = scmp.eq.s32.totalorder %s18, 0
    %p194 = por %p192, %p193
    %p195 = scmp.ne.s32.totalorder %s181, %s182
    %p196 = scmp.eq.s32.totalorder %s19, 8
    %p197 = por %p195, %p196
    %p199 = scmp.ne.s32.totalorder %s182, %s198
    %p200 = scmp.eq.s32.totalorder %s19, 0
    %p201 = por %p199, %p200
    %p202 = scmp.le.s32.totalorder 1, %s13
    %p203 = scmp.lt.s32.totalorder %s13, 10
    %p204 = pnand %p202, %p203
    %p205 = pneg %p204
    // Predicated region
    $region9: #{self_preact_block_forward.6} parent=5 // pred_check
      _
    $region10: #{self_preact_block_forward.6} parent=5 // pred_check_branch
      %207 = sbr.rel (%p204) target = $region12
    $region11: #{self_preact_block_forward.6} parent=5 // pred_region
      %s208 = ssub.s32 %s13, 1
      // Predicated region
      $region13: #{self_preact_block_forward.6} parent=11 // pred_check
        %p209 = pneg %p74
      $region14: #{self_preact_block_forward.6} parent=11 // pred_check_branch
        %211 = sbr.rel (%p209) target = $region16
      $region15: #{self_preact_block_forward.6} parent=11 // pred_region
        _
      $region16: #{self_preact_block_forward.6} parent=11 // pred_fallthru
        _
      // Predicated region
      $region17: #{self_preact_block_forward.6} parent=11 // pred_check
        %p212 = pneg %p100
      $region18: #{self_preact_block_forward.6} parent=11 // pred_check_branch
        %214 = sbr.rel (%p212) target = $region20
      $region19: #{self_preact_block_forward.6} parent=11 // pred_region
        %s215 = smul.u32 16, %s22
        %p216 = scmp.lt.s32.totalorder %s215, 15
        %s217 = scalar_select %p216, %s215, 15
        %s218 = smul.addr %s217, 8
        %s219 = scalar_lea.vmem %s2, %s218
        %s220 = smul.u32 16, %s22
      $region20: #{self_preact_block_forward.6} parent=11 // pred_fallthru
        _
      // Predicated region
      $region21: #{self_preact_block_forward.6} parent=11 // pred_check
        %p221 = pneg %p121
      $region22: #{self_preact_block_forward.6} parent=11 // pred_check_branch
        %223 = sbr.rel (%p221) target = $region24
      $region23: #{self_preact_block_forward.6} parent=11 // pred_region
        _
      $region24: #{self_preact_block_forward.6} parent=11 // pred_fallthru
        _
      // Predicated region
      $region25: #{self_preact_block_forward.6} parent=11 // pred_check
        %p224 = pneg %p142
      $region26: #{self_preact_block_forward.6} parent=11 // pred_check_branch
        %226 = sbr.rel (%p224) target = $region28
      $region27: #{self_preact_block_forward.6} parent=11 // pred_region
        _
      $region28: #{self_preact_block_forward.6} parent=11 // pred_fallthru
        _
    $region12: #{self_preact_block_forward.6} parent=5 // pred_fallthru
      _
    %p227 = scmp.lt.s32.totalorder %s13, 9
    // Predicated region
    $region29: #{self_preact_block_forward.6} parent=5 // pred_check
      %p228 = pneg %p227
    $region30: #{self_preact_block_forward.6} parent=5 // pred_check_branch
      %230 = sbr.rel (%p228) target = $region32
    $region31: #{self_preact_block_forward.6} parent=5 // pred_region
      // Predicated region
      $region33: #{self_preact_block_forward.6} parent=31 // pred_check
        %p231 = pneg %p47
      $region34: #{self_preact_block_forward.6} parent=31 // pred_check_branch
        %233 = sbr.rel (%p231) target = $region36
      $region35: #{self_preact_block_forward.6} parent=31 // pred_region
        %s234 = smul.u32 16, %s20
        %p235 = scmp.lt.s32.totalorder %s21, 8
        %s236 = scalar_select %p235, %s21, 8
        %p237 = scmp.lt.s32.totalorder %s234, 15
        %s238 = scalar_select %p237, %s234, 15
        %s239 = smul.addr %s236, 16
        %s240 = sadd.s32 %s238, %s239
        %s241 = smul.addr %s240, 8
        %s242 = scalar_lea.vmem %s0, %s241
        %s243 = smul.u32 16, %s20
      $region36: #{self_preact_block_forward.6} parent=31 // pred_fallthru
        _
    $region32: #{self_preact_block_forward.6} parent=5 // pred_fallthru
      _
    %p244 = scmp.le.s32.totalorder 1, %s13
    %p245 = scmp.lt.s32.totalorder %s13, 10
    %p246 = pnand %p244, %p245
    %p247 = pneg %p246
    // Predicated region
    $region37: #{self_preact_block_forward.6} parent=5 // pred_check
      _
    $region38: #{self_preact_block_forward.6} parent=5 // pred_check_branch
      %249 = sbr.rel (%p246) target = $region40
    $region39: #{self_preact_block_forward.6} parent=5 // pred_region
      %s250 = ssub.s32 %s13, 1
      %s251 = smul.u32 16, %s22
      %p252 = scmp.lt.s32.totalorder %s23, 8
      %s253 = scalar_select %p252, %s23, 8
      %p254 = scmp.lt.s32.totalorder %s251, 15
      %s255 = scalar_select %p254, %s251, 15
      %s256 = smul.addr %s253, 16
      %s257 = sadd.s32 %s255, %s256
      %s258 = smul.addr %s257, 8
      %s259 = scalar_lea.vmem %s0, %s258
      %p260 = pneg %p53
      %p261 = pneg %p50
      %p262 = pneg %p74
      %p263 = pneg %p71
      %s264 = smul.u32 16, %s22
      %p265 = scmp.lt.s32.totalorder %s264, 15
      %s266 = scalar_select %p265, %s264, 15
      %s267 = smul.addr %s266, 8
      %s268 = scalar_lea.vmem %s2, %s267
      %p269 = pneg %p100
      %p270 = pneg %p97
      %p271 = pneg %p121
      %p272 = pneg %p118
      %p273 = pneg %p142
      %p274 = pneg %p139
      %p275 = pneg %p168
      %p276 = pneg %p165
      %s277 = smul.u32 16, %s22
      %p278 = scmp.lt.s32.totalorder %s277, 15
      %s279 = scalar_select %p278, %s277, 15
      %s280 = smul.addr %s279, 8
      %s281 = scalar_lea.vmem %s5, %s280
      %p282 = pneg %p194
      %p283 = pneg %p191
      %p284 = scmp.lt.s32.totalorder %s22, 0
      %s285 = scalar_select %p284, %s22, 0
      %s286 = smul.addr %s285, 8
      %s287 = scalar_lea.vmem %s6, %s286
      %s288 = smul.u32 16, %s22
      %p289 = scmp.lt.s32.totalorder %s23, 8
      %s290 = scalar_select %p289, %s23, 8
      %p291 = scmp.lt.s32.totalorder %s288, 15
      %s292 = scalar_select %p291, %s288, 15
      %s293 = smul.addr %s290, 16
      %s294 = sadd.s32 %s292, %s293
      %s295 = smul.addr %s294, 8
      %s296 = scalar_lea.vmem %s0, %s295
      %s297 = smul.u32 16, %s22
      %s298 = smul.u32 16, %s22
      %p299 = scmp.lt.s32.totalorder %s298, 15
      %s300 = scalar_select %p299, %s298, 15
      %s301 = smul.addr %s300, 8
      %s302 = scalar_lea.vmem %s2, %s301
      %s303 = smul.u32 16, %s22
      %s304 = smul.u32 16, %s22
      %p305 = scmp.lt.s32.totalorder %s304, 15
      %s306 = scalar_select %p305, %s304, 15
      %s307 = smul.addr %s306, 8
      %s308 = scalar_lea.vmem %s5, %s307
      %s309 = smul.u32 16, %s22
      %p310 = scmp.lt.s32.totalorder %s22, 0
      %s311 = scalar_select %p310, %s22, 0
      %s312 = smul.addr %s311, 8
      %s313 = scalar_lea.vmem %s6, %s312
      %p314 = scmp.eq.s32.totalorder %s23, 0
      // Predicated region
      $region41: #{self_preact_block_forward.6} parent=39 // pred_check
        %p315 = pneg %p314
      $region42: #{self_preact_block_forward.6} parent=39 // pred_check_branch
        %317 = sbr.rel (%p315) target = $region44
      $region43: #{self_preact_block_forward.6} parent=39 // pred_region
        %vm318 = vcmask 31744
        %319 = vst.msk [vmem:[%s308] sm:$0xff] %vm318, 0.0
        %320 = vst.msk [vmem:[%s308 + $0x8] sm:$0xff] %vm318, 0.0
        %321 = vst.msk [vmem:[%s308 + $0x10] sm:$0xff] %vm318, 0.0
        %322 = vst.msk [vmem:[%s308 + $0x18] sm:$0xff] %vm318, 0.0
        %323 = vst.msk [vmem:[%s308 + $0x20] sm:$0xff] %vm318, 0.0
        %324 = vst.msk [vmem:[%s308 + $0x28] sm:$0xff] %vm318, 0.0
        %325 = vst.msk [vmem:[%s308 + $0x30] sm:$0xff] %vm318, 0.0
        %326 = vst.msk [vmem:[%s308 + $0x38] sm:$0xff] %vm318, 0.0
        %327 = vst.msk [vmem:[%s308 + $0x40] sm:$0xff] %vm318, 0.0
        %328 = vst.msk [vmem:[%s308 + $0x48] sm:$0xff] %vm318, 0.0
        %329 = vst.msk [vmem:[%s308 + $0x50] sm:$0xff] %vm318, 0.0
        %330 = vst.msk [vmem:[%s308 + $0x58] sm:$0xff] %vm318, 0.0
        %331 = vst.msk [vmem:[%s308 + $0x60] sm:$0xff] %vm318, 0.0
        %332 = vst.msk [vmem:[%s308 + $0x68] sm:$0xff] %vm318, 0.0
        %333 = vst.msk [vmem:[%s308 + $0x70] sm:$0xff] %vm318, 0.0
        %334 = vst.msk [vmem:[%s308 + $0x78] sm:$0xff] %vm318, 0.0
      $region44: #{self_preact_block_forward.6} parent=39 // pred_fallthru
        _
      %v335 = vld [vmem:[%s308] sm:$0xff]
      %v336 = vld [vmem:[%s308 + $0x8] sm:$0xff]
      %v337 = vld [vmem:[%s308 + $0x10] sm:$0xff]
      %v338 = vld [vmem:[%s308 + $0x18] sm:$0xff]
      %v339 = vld [vmem:[%s308 + $0x20] sm:$0xff]
      %v340 = vld [vmem:[%s308 + $0x28] sm:$0xff]
      %v341 = vld [vmem:[%s308 + $0x30] sm:$0xff]
      %v342 = vld [vmem:[%s308 + $0x38] sm:$0xff]
      %v343 = vld [vmem:[%s308 + $0x40] sm:$0xff]
      %v344 = vld [vmem:[%s308 + $0x48] sm:$0xff]
      %v345 = vld [vmem:[%s308 + $0x50] sm:$0xff]
      %v346 = vld [vmem:[%s308 + $0x58] sm:$0xff]
      %v347 = vld [vmem:[%s308 + $0x60] sm:$0xff]
      %v348 = vld [vmem:[%s308 + $0x68] sm:$0xff]
      %v349 = vld [vmem:[%s308 + $0x70] sm:$0xff]
      %v350 = vld [vmem:[%s308 + $0x78] sm:$0xff]
      %v351 = vld [vmem:[%s296] sm:$0xff]
      %v352 = vld [vmem:[%s296 + $0x8] sm:$0xff]
      %v353 = vld [vmem:[%s296 + $0x10] sm:$0xff]
      %v354 = vld [vmem:[%s296 + $0x18] sm:$0xff]
      %v355 = vld [vmem:[%s296 + $0x20] sm:$0xff]
      %v356 = vld [vmem:[%s296 + $0x28] sm:$0xff]
      %v357 = vld [vmem:[%s296 + $0x30] sm:$0xff]
      %v358 = vld [vmem:[%s296 + $0x38] sm:$0xff]
      %v359 = vld [vmem:[%s296 + $0x40] sm:$0xff]
      %v360 = vld [vmem:[%s296 + $0x48] sm:$0xff]
      %v361 = vld [vmem:[%s296 + $0x50] sm:$0xff]
      %v362 = vld [vmem:[%s296 + $0x58] sm:$0xff]
      %v363 = vld [vmem:[%s296 + $0x60] sm:$0xff]
      %v364 = vld [vmem:[%s296 + $0x68] sm:$0xff]
      %v365 = vld [vmem:[%s296 + $0x70] sm:$0xff]
      %v366 = vld [vmem:[%s296 + $0x78] sm:$0xff]
      %s367 = smul.u32 %s23, 4
      %s368 = scalar_lea.vmem %s1, %s367
      %v369 = vld [vmem:[%s368] sm:$0xf]
      %vm370 = vcmask 31744
      %v372 = vsel %vm370, %v351, 0
      %v375 = vsel %vm370, %v352, 0
      %v378 = vsel %vm370, %v353, 0
      %v381 = vsel %vm370, %v354, 0
      %v384 = vsel %vm370, %v355, 0
      %v387 = vsel %vm370, %v356, 0
      %v390 = vsel %vm370, %v357, 0
      %v393 = vsel %vm370, %v358, 0
      %v396 = vsel %vm370, %v359, 0
      %v399 = vsel %vm370, %v360, 0
      %v402 = vsel %vm370, %v361, 0
      %v405 = vsel %vm370, %v362, 0
      %v408 = vsel %vm370, %v363, 0
      %v411 = vsel %vm370, %v364, 0
      %v414 = vsel %vm370, %v365, 0
      %v417 = vsel %vm370, %v366, 0
      %vm419 = vcmask 1043456
      %v421 = vsel %vm419, %v369, 0
      %423 = vmatprep.subr.mxu0 0.0
      %424 = vmatpush1.msra.mxu0 0.0
      %425 = vmatprep.subr.mxu0 0.0
      %426 = vmatpush1.msra.mxu0 0.0
      %427 = vmatprep.subr.mxu0 0.0
      %428 = vmatpush1.msra.mxu0 0.0
      %429 = vmatprep.subr.mxu0 0.0
      %430 = vmatpush1.msra.mxu0 0.0
      %431 = vmatprep.subr.mxu0 0.0
      %432 = vmatpush1.msra.mxu0 0.0
      %433 = vmatprep.subr.mxu0 0.0
      %434 = vmatpush1.msra.mxu0 0.0
      %435 = vmatprep.subr.mxu0 0.0
      %436 = vmatpush1.msra.mxu0 0.0
      %437 = vmatprep.subr.mxu0 0.0
      %438 = vmatpush1.msra.mxu0 0.0
      %439 = vmatprep.subr.mxu0 0.0
      %440 = vmatpush1.msra.mxu0 0.0
      %441 = vmatprep.subr.mxu0 0.0
      %442 = vmatpush1.msra.mxu0 0.0
      %443 = vmatprep.subr.mxu0 0.0
      %444 = vmatpush1.msra.mxu0 0.0
      %445 = vmatprep.subr.mxu0 0.0
      %446 = vmatpush1.msra.mxu0 0.0
      %447 = vmatprep.subr.mxu0 0.0
      %448 = vmatpush1.msra.mxu0 0.0
      %449 = vmatprep.subr.mxu0 0.0
      %450 = vmatpush1.msra.mxu0 0.0
      %451 = vmatprep.subr.mxu0 0.0
      %452 = vmatpush1.msra.mxu0 0.0
      %453 = vmatprep.subr.mxu0 0.0
      %454 = vmatpush1.msra.mxu0 %v421
      %455 = vmatprep.subr.mxu0 0.0
      %456 = vmatpush2.msra.mxu0 0.0
      %457 = vmatprep.subr.mxu0 0.0
      %458 = vmatpush2.msra.mxu0 0.0
      %459 = vmatprep.subr.mxu0 0.0
      %460 = vmatpush2.msra.mxu0 0.0
      %461 = vmatprep.subr.mxu0 0.0
      %462 = vmatpush2.msra.mxu0 0.0
      %463 = vmatprep.subr.mxu0 0.0
      %464 = vmatpush2.msra.mxu0 0.0
      %465 = vmatprep.subr.mxu0 0.0
      %466 = vmatpush2.msra.mxu0 0.0
      %467 = vmatprep.subr.mxu0 0.0
      %468 = vmatpush2.msra.mxu0 0.0
      %469 = vmatprep.subr.mxu0 0.0
      %470 = vmatpush2.msra.mxu0 0.0
      %471 = vmatprep.subr.mxu0 0.0
      %472 = vmatpush2.msra.mxu0 0.0
      %473 = vmatprep.subr.mxu0 0.0
      %474 = vmatpush2.msra.mxu0 0.0
      %475 = vmatprep.subr.mxu0 0.0
      %476 = vmatpush2.msra.mxu0 0.0
      %477 = vmatprep.subr.mxu0 0.0
      %478 = vmatpush2.msra.mxu0 0.0
      %479 = vmatprep.subr.mxu0 0.0
      %480 = vmatpush2.msra.mxu0 0.0
      %481 = vmatprep.subr.mxu0 0.0
      %482 = vmatpush2.msra.mxu0 0.0
      %483 = vmatprep.subr.mxu0 0.0
      %484 = vmatpush2.msra.mxu0 0.0
      %485 = vmatprep.subr.mxu0 0.0
      %486 = vmatpush2.msra.mxu0 0.0
      %487 = vmatprep.mubr.f32.mxu0 0.0
      %488 = vmatmul.mubr.f32.gmra.mxu0 %v372
      %v489 = vpop.f32.mrf.mxu0
      %v490 = vadd.f32 0.0, %v489
      %v491 = vpop.f32.mrf.mxu0
      %492 = vmatprep.mubr.f32.mxu0 0.0
      %493 = vmatmul.mubr.f32.gmra.mxu0 %v375
      %v494 = vpop.f32.mrf.mxu0
      %v495 = vadd.f32 0.0, %v494
      %v496 = vpop.f32.mrf.mxu0
      %497 = vmatprep.mubr.f32.mxu0 0.0
      %498 = vmatmul.mubr.f32.gmra.mxu0 %v378
      %v499 = vpop.f32.mrf.mxu0
      %v500 = vadd.f32 0.0, %v499
      %v501 = vpop.f32.mrf.mxu0
      %502 = vmatprep.mubr.f32.mxu0 0.0
      %503 = vmatmul.mubr.f32.gmra.mxu0 %v381
      %v504 = vpop.f32.mrf.mxu0
      %v505 = vadd.f32 0.0, %v504
      %v506 = vpop.f32.mrf.mxu0
      %507 = vmatprep.mubr.f32.mxu0 0.0
      %508 = vmatmul.mubr.f32.gmra.mxu0 %v384
      %v509 = vpop.f32.mrf.mxu0
      %v510 = vadd.f32 0.0, %v509
      %v511 = vpop.f32.mrf.mxu0
      %512 = vmatprep.mubr.f32.mxu0 0.0
      %513 = vmatmul.mubr.f32.gmra.mxu0 %v387
      %v514 = vpop.f32.mrf.mxu0
      %v515 = vadd.f32 0.0, %v514
      %v516 = vpop.f32.mrf.mxu0
      %517 = vmatprep.mubr.f32.mxu0 0.0
      %518 = vmatmul.mubr.f32.gmra.mxu0 %v390
      %v519 = vpop.f32.mrf.mxu0
      %v520 = vadd.f32 0.0, %v519
      %v521 = vpop.f32.mrf.mxu0
      %522 = vmatprep.mubr.f32.mxu0 0.0
      %523 = vmatmul.mubr.f32.gmra.mxu0 %v393
      %v524 = vpop.f32.mrf.mxu0
      %v525 = vadd.f32 0.0, %v524
      %v526 = vpop.f32.mrf.mxu0
      %527 = vmatprep.mubr.f32.mxu0 0.0
      %528 = vmatmul.mubr.f32.gmra.mxu0 %v396
      %v529 = vpop.f32.mrf.mxu0
      %v530 = vadd.f32 0.0, %v529
      %v531 = vpop.f32.mrf.mxu0
      %532 = vmatprep.mubr.f32.mxu0 0.0
      %533 = vmatmul.mubr.f32.gmra.mxu0 %v399
      %v534 = vpop.f32.mrf.mxu0
      %v535 = vadd.f32 0.0, %v534
      %v536 = vpop.f32.mrf.mxu0
      %537 = vmatprep.mubr.f32.mxu0 0.0
      %538 = vmatmul.mubr.f32.gmra.mxu0 %v402
      %v539 = vpop.f32.mrf.mxu0
      %v540 = vadd.f32 0.0, %v539
      %v541 = vpop.f32.mrf.mxu0
      %542 = vmatprep.mubr.f32.mxu0 0.0
      %543 = vmatmul.mubr.f32.gmra.mxu0 %v405
      %v544 = vpop.f32.mrf.mxu0
      %v545 = vadd.f32 0.0, %v544
      %v546 = vpop.f32.mrf.mxu0
      %547 = vmatprep.mubr.f32.mxu0 0.0
      %548 = vmatmul.mubr.f32.gmra.mxu0 %v408
      %v549 = vpop.f32.mrf.mxu0
      %v550 = vadd.f32 0.0, %v549
      %v551 = vpop.f32.mrf.mxu0
      %552 = vmatprep.mubr.f32.mxu0 0.0
      %553 = vmatmul.mubr.f32.gmra.mxu0 %v411
      %v554 = vpop.f32.mrf.mxu0
      %v555 = vadd.f32 0.0, %v554
      %v556 = vpop.f32.mrf.mxu0
      %557 = vmatprep.mubr.f32.mxu0 0.0
      %558 = vmatmul.mubr.f32.gmra.mxu0 %v414
      %v559 = vpop.f32.mrf.mxu0
      %v560 = vadd.f32 0.0, %v559
      %v561 = vpop.f32.mrf.mxu0
      %562 = vmatprep.mubr.f32.mxu0 0.0
      %563 = vmatmul.mubr.f32.gmra.mxu0 %v417
      %v564 = vpop.f32.mrf.mxu0
      %v565 = vadd.f32 0.0, %v564
      %v566 = vpop.f32.mrf.mxu0
      %567 = vdwg.mxu0
      %v568 = vadd.f32 %v335, %v490
      %v569 = vadd.f32 %v336, %v495
      %v570 = vadd.f32 %v337, %v500
      %v571 = vadd.f32 %v338, %v505
      %v572 = vadd.f32 %v339, %v510
      %v573 = vadd.f32 %v340, %v515
      %v574 = vadd.f32 %v341, %v520
      %v575 = vadd.f32 %v342, %v525
      %v576 = vadd.f32 %v343, %v530
      %v577 = vadd.f32 %v344, %v535
      %v578 = vadd.f32 %v345, %v540
      %v579 = vadd.f32 %v346, %v545
      %v580 = vadd.f32 %v347, %v550
      %v581 = vadd.f32 %v348, %v555
      %v582 = vadd.f32 %v349, %v560
      %v583 = vadd.f32 %v350, %v565
      %584 = vst.msk [vmem:[%s308] sm:$0xff] %vm370, %v568
      %585 = vst.msk [vmem:[%s308 + $0x8] sm:$0xff] %vm370, %v569
      %586 = vst.msk [vmem:[%s308 + $0x10] sm:$0xff] %vm370, %v570
      %587 = vst.msk [vmem:[%s308 + $0x18] sm:$0xff] %vm370, %v571
      %588 = vst.msk [vmem:[%s308 + $0x20] sm:$0xff] %vm370, %v572
      %589 = vst.msk [vmem:[%s308 + $0x28] sm:$0xff] %vm370, %v573
      %590 = vst.msk [vmem:[%s308 + $0x30] sm:$0xff] %vm370, %v574
      %591 = vst.msk [vmem:[%s308 + $0x38] sm:$0xff] %vm370, %v575
      %592 = vst.msk [vmem:[%s308 + $0x40] sm:$0xff] %vm370, %v576
      %593 = vst.msk [vmem:[%s308 + $0x48] sm:$0xff] %vm370, %v577
      %594 = vst.msk [vmem:[%s308 + $0x50] sm:$0xff] %vm370, %v578
      %595 = vst.msk [vmem:[%s308 + $0x58] sm:$0xff] %vm370, %v579
      %596 = vst.msk [vmem:[%s308 + $0x60] sm:$0xff] %vm370, %v580
      %597 = vst.msk [vmem:[%s308 + $0x68] sm:$0xff] %vm370, %v581
      %598 = vst.msk [vmem:[%s308 + $0x70] sm:$0xff] %vm370, %v582
      %599 = vst.msk [vmem:[%s308 + $0x78] sm:$0xff] %vm370, %v583
      %p600 = scmp.eq.s32.totalorder %s23, 8
      // Predicated region
      $region45: #{self_preact_block_forward.6} parent=39 // pred_check
        %p601 = pneg %p600
      $region46: #{self_preact_block_forward.6} parent=39 // pred_check_branch
        %603 = sbr.rel (%p601) target = $region48
      $region47: #{self_preact_block_forward.6} parent=39 // pred_region
        %v604 = vld [vmem:[%s308] sm:$0xff]
        %v605 = vld [vmem:[%s308 + $0x8] sm:$0xff]
        %v606 = vld [vmem:[%s308 + $0x10] sm:$0xff]
        %v607 = vld [vmem:[%s308 + $0x18] sm:$0xff]
        %v608 = vld [vmem:[%s308 + $0x20] sm:$0xff]
        %v609 = vld [vmem:[%s308 + $0x28] sm:$0xff]
        %v610 = vld [vmem:[%s308 + $0x30] sm:$0xff]
        %v611 = vld [vmem:[%s308 + $0x38] sm:$0xff]
        %v612 = vld [vmem:[%s308 + $0x40] sm:$0xff]
        %v613 = vld [vmem:[%s308 + $0x48] sm:$0xff]
        %v614 = vld [vmem:[%s308 + $0x50] sm:$0xff]
        %v615 = vld [vmem:[%s308 + $0x58] sm:$0xff]
        %v616 = vld [vmem:[%s308 + $0x60] sm:$0xff]
        %v617 = vld [vmem:[%s308 + $0x68] sm:$0xff]
        %v618 = vld [vmem:[%s308 + $0x70] sm:$0xff]
        %v619 = vld [vmem:[%s308 + $0x78] sm:$0xff]
        %v620 = vld [vmem:[%s302] sm:$0xff]
        %v621 = vld [vmem:[%s302 + $0x8] sm:$0xff]
        %v622 = vld [vmem:[%s302 + $0x10] sm:$0xff]
        %v623 = vld [vmem:[%s302 + $0x18] sm:$0xff]
        %v624 = vld [vmem:[%s302 + $0x20] sm:$0xff]
        %v625 = vld [vmem:[%s302 + $0x28] sm:$0xff]
        %v626 = vld [vmem:[%s302 + $0x30] sm:$0xff]
        %v627 = vld [vmem:[%s302 + $0x38] sm:$0xff]
        %v628 = vld [vmem:[%s302 + $0x40] sm:$0xff]
        %v629 = vld [vmem:[%s302 + $0x48] sm:$0xff]
        %v630 = vld [vmem:[%s302 + $0x50] sm:$0xff]
        %v631 = vld [vmem:[%s302 + $0x58] sm:$0xff]
        %v632 = vld [vmem:[%s302 + $0x60] sm:$0xff]
        %v633 = vld [vmem:[%s302 + $0x68] sm:$0xff]
        %v634 = vld [vmem:[%s302 + $0x70] sm:$0xff]
        %v635 = vld [vmem:[%s302 + $0x78] sm:$0xff]
        %v636 = vadd.f32 %v604, %v620
        %v637 = vadd.f32 %v605, %v621
        %v638 = vadd.f32 %v606, %v622
        %v639 = vadd.f32 %v607, %v623
        %v640 = vadd.f32 %v608, %v624
        %v641 = vadd.f32 %v609, %v625
        %v642 = vadd.f32 %v610, %v626
        %v643 = vadd.f32 %v611, %v627
        %v644 = vadd.f32 %v612, %v628
        %v645 = vadd.f32 %v613, %v629
        %v646 = vadd.f32 %v614, %v630
        %v647 = vadd.f32 %v615, %v631
        %v648 = vadd.f32 %v616, %v632
        %v649 = vadd.f32 %v617, %v633
        %v650 = vadd.f32 %v618, %v634
        %v651 = vadd.f32 %v619, %v635
        %v652 = vld [vmem:[%s3] sm:$0x1]
        %v654 = vlaneseq
        %v655 = vshrl.u32 %v654, 7
        %v656 = vsub.s32 0, %v655
        %v657 = vrot.slane %v652, %v656
        %v659 = vmul.f32 %v636, %v657
        %v660 = vmul.f32 %v637, %v657
        %v661 = vmul.f32 %v638, %v657
        %v662 = vmul.f32 %v639, %v657
        %v663 = vmul.f32 %v640, %v657
        %v664 = vmul.f32 %v641, %v657
        %v665 = vmul.f32 %v642, %v657
        %v666 = vmul.f32 %v643, %v657
        %v667 = vmul.f32 %v644, %v657
        %v668 = vmul.f32 %v645, %v657
        %v669 = vmul.f32 %v646, %v657
        %v670 = vmul.f32 %v647, %v657
        %v671 = vmul.f32 %v648, %v657
        %v672 = vmul.f32 %v649, %v657
        %v673 = vmul.f32 %v650, %v657
        %v674 = vmul.f32 %v651, %v657
        %v675 = vld [vmem:[%s4] sm:$0x1]
        %v677 = vlaneseq
        %v678 = vshrl.u32 %v677, 7
        %v679 = vsub.s32 0, %v678
        %v680 = vrot.slane %v675, %v679
        %v682 = vadd.f32 %v659, %v680
        %v683 = vadd.f32 %v660, %v680
        %v684 = vadd.f32 %v661, %v680
        %v685 = vadd.f32 %v662, %v680
        %v686 = vadd.f32 %v663, %v680
        %v687 = vadd.f32 %v664, %v680
        %v688 = vadd.f32 %v665, %v680
        %v689 = vadd.f32 %v666, %v680
        %v690 = vadd.f32 %v667, %v680
        %v691 = vadd.f32 %v668, %v680
        %v692 = vadd.f32 %v669, %v680
        %v693 = vadd.f32 %v670, %v680
        %v694 = vadd.f32 %v671, %v680
        %v695 = vadd.f32 %v672, %v680
        %v696 = vadd.f32 %v673, %v680
        %v697 = vadd.f32 %v674, %v680
        %v698 = vmax.f32 %v682, 0.0
        %v699 = vmax.f32 %v683, 0.0
        %v700 = vmax.f32 %v684, 0.0
        %v701 = vmax.f32 %v685, 0.0
        %v702 = vmax.f32 %v686, 0.0
        %v703 = vmax.f32 %v687, 0.0
        %v704 = vmax.f32 %v688, 0.0
        %v705 = vmax.f32 %v689, 0.0
        %v706 = vmax.f32 %v690, 0.0
        %v707 = vmax.f32 %v691, 0.0
        %v708 = vmax.f32 %v692, 0.0
        %v709 = vmax.f32 %v693, 0.0
        %v710 = vmax.f32 %v694, 0.0
        %v711 = vmax.f32 %v695, 0.0
        %v712 = vmax.f32 %v696, 0.0
        %v713 = vmax.f32 %v697, 0.0
        %714 = vst.msk [vmem:[%s308] sm:$0xff] %vm370, %v698
        %715 = vst.msk [vmem:[%s308 + $0x8] sm:$0xff] %vm370, %v699
        %716 = vst.msk [vmem:[%s308 + $0x10] sm:$0xff] %vm370, %v700
        %717 = vst.msk [vmem:[%s308 + $0x18] sm:$0xff] %vm370, %v701
        %718 = vst.msk [vmem:[%s308 + $0x20] sm:$0xff] %vm370, %v702
        %719 = vst.msk [vmem:[%s308 + $0x28] sm:$0xff] %vm370, %v703
        %720 = vst.msk [vmem:[%s308 + $0x30] sm:$0xff] %vm370, %v704
        %721 = vst.msk [vmem:[%s308 + $0x38] sm:$0xff] %vm370, %v705
        %722 = vst.msk [vmem:[%s308 + $0x40] sm:$0xff] %vm370, %v706
        %723 = vst.msk [vmem:[%s308 + $0x48] sm:$0xff] %vm370, %v707
        %724 = vst.msk [vmem:[%s308 + $0x50] sm:$0xff] %vm370, %v708
        %725 = vst.msk [vmem:[%s308 + $0x58] sm:$0xff] %vm370, %v709
        %726 = vst.msk [vmem:[%s308 + $0x60] sm:$0xff] %vm370, %v710
        %727 = vst.msk [vmem:[%s308 + $0x68] sm:$0xff] %vm370, %v711
        %728 = vst.msk [vmem:[%s308 + $0x70] sm:$0xff] %vm370, %v712
        %729 = vst.msk [vmem:[%s308 + $0x78] sm:$0xff] %vm370, %v713
        %v730 = vsel %vm370, %v698, 0.0
        %v731 = vsel %vm370, %v699, 0.0
        %v732 = vadd.f32 %v730, %v731
        %v733 = vrot.slane %v732, 4
        %v734 = vadd.f32 %v732, %v733
        %v735 = vrot.slane %v734, 2
        %v736 = vadd.f32 %v734, %v735
        %v737 = vrot.slane %v736, 1
        %v738 = vadd.f32 %v736, %v737
        %v739 = vsel %vm370, %v700, 0.0
        %v740 = vsel %vm370, %v701, 0.0
        %v741 = vadd.f32 %v739, %v740
        %v742 = vrot.slane %v741, 4
        %v743 = vadd.f32 %v741, %v742
        %v744 = vrot.slane %v743, 2
        %v745 = vadd.f32 %v743, %v744
        %v746 = vrot.slane %v745, 1
        %v747 = vadd.f32 %v745, %v746
        %v748 = vsel %vm370, %v702, 0.0
        %v749 = vsel %vm370, %v703, 0.0
        %v750 = vadd.f32 %v748, %v749
        %v751 = vrot.slane %v750, 4
        %v752 = vadd.f32 %v750, %v751
        %v753 = vrot.slane %v752, 2
        %v754 = vadd.f32 %v752, %v753
        %v755 = vrot.slane %v754, 1
        %v756 = vadd.f32 %v754, %v755
        %v757 = vsel %vm370, %v704, 0.0
        %v758 = vsel %vm370, %v705, 0.0
        %v759 = vadd.f32 %v757, %v758
        %v760 = vrot.slane %v759, 4
        %v761 = vadd.f32 %v759, %v760
        %v762 = vrot.slane %v761, 2
        %v763 = vadd.f32 %v761, %v762
        %v764 = vrot.slane %v763, 1
        %v765 = vadd.f32 %v763, %v764
        %v766 = vsel %vm370, %v706, 0.0
        %v767 = vsel %vm370, %v707, 0.0
        %v768 = vadd.f32 %v766, %v767
        %v769 = vrot.slane %v768, 4
        %v770 = vadd.f32 %v768, %v769
        %v771 = vrot.slane %v770, 2
        %v772 = vadd.f32 %v770, %v771
        %v773 = vrot.slane %v772, 1
        %v774 = vadd.f32 %v772, %v773
        %v775 = vsel %vm370, %v708, 0.0
        %v776 = vsel %vm370, %v709, 0.0
        %v777 = vadd.f32 %v775, %v776
        %v778 = vrot.slane %v777, 4
        %v779 = vadd.f32 %v777, %v778
        %v780 = vrot.slane %v779, 2
        %v781 = vadd.f32 %v779, %v780
        %v782 = vrot.slane %v781, 1
        %v783 = vadd.f32 %v781, %v782
        %v784 = vsel %vm370, %v710, 0.0
        %v785 = vsel %vm370, %v711, 0.0
        %v786 = vadd.f32 %v784, %v785
        %v787 = vrot.slane %v786, 4
        %v788 = vadd.f32 %v786, %v787
        %v789 = vrot.slane %v788, 2
        %v790 = vadd.f32 %v788, %v789
        %v791 = vrot.slane %v790, 1
        %v792 = vadd.f32 %v790, %v791
        %v793 = vsel %vm370, %v712, 0.0
        %v794 = vsel %vm370, %v713, 0.0
        %v795 = vadd.f32 %v793, %v794
        %v796 = vrot.slane %v795, 4
        %v797 = vadd.f32 %v795, %v796
        %v798 = vrot.slane %v797, 2
        %v799 = vadd.f32 %v797, %v798
        %v800 = vrot.slane %v799, 1
        %v801 = vadd.f32 %v799, %v800
        %v802 = vmul.f32 %v738, 0.0625
        %v803 = vmul.f32 %v747, 0.0625
        %v804 = vmul.f32 %v756, 0.0625
        %v805 = vmul.f32 %v765, 0.0625
        %v806 = vmul.f32 %v774, 0.0625
        %v807 = vmul.f32 %v783, 0.0625
        %v808 = vmul.f32 %v792, 0.0625
        %v809 = vmul.f32 %v801, 0.0625
        %vm818 = vcmask 1041409
        %v819 = vsel %vm818, %v803, %v802
        %vm820 = vcmask 1042434
        %v821 = vsel %vm820, %v804, %v819
        %vm822 = vcmask 1043459
        %v823 = vsel %vm822, %v805, %v821
        %vm824 = vcmask 1044484
        %v825 = vsel %vm824, %v806, %v823
        %vm826 = vcmask 1045509
        %v827 = vsel %vm826, %v807, %v825
        %vm828 = vcmask 1046534
        %v829 = vsel %vm828, %v808, %v827
        %vm830 = vcmask 1047559
        %v831 = vsel %vm830, %v809, %v829
        %833 = vst.msk [vmem:[%s313] sm:$0xff] %vm370, %v831
      $region48: #{self_preact_block_forward.6} parent=39 // pred_fallthru
        _
      %s834 = smul.u32 16, %s22
      %p835 = scmp.lt.s32.totalorder %s834, 15
      %s836 = scalar_select %p835, %s834, 15
      %s837 = smul.addr %s836, 8
      %s838 = scalar_lea.vmem %s5, %s837
      %p839 = scmp.lt.s32.totalorder %s22, 0
      %s840 = scalar_select %p839, %s22, 0
      %s841 = smul.addr %s840, 8
      %s842 = scalar_lea.vmem %s6, %s841
      // Predicated region
      $region49: #{self_preact_block_forward.6} parent=39 // pred_check
        %p843 = pneg %p165
      $region50: #{self_preact_block_forward.6} parent=39 // pred_check_branch
        %845 = sbr.rel (%p843) target = $region52
      $region51: #{self_preact_block_forward.6} parent=39 // pred_region
        %s846 = smul.u32 16, %s22
      $region52: #{self_preact_block_forward.6} parent=39 // pred_fallthru
        _
      // Predicated region
      $region53: #{self_preact_block_forward.6} parent=39 // pred_check
        %p847 = pneg %p191
      $region54: #{self_preact_block_forward.6} parent=39 // pred_check_branch
        %849 = sbr.rel (%p847) target = $region56
      $region55: #{self_preact_block_forward.6} parent=39 // pred_region
        _
      $region56: #{self_preact_block_forward.6} parent=39 // pred_fallthru
        _
      // Predicated region
      $region57: #{self_preact_block_forward.6} parent=39 // pred_check
        %p850 = pneg %p165
      $region58: #{self_preact_block_forward.6} parent=39 // pred_check_branch
        %852 = sbr.rel (%p850) target = $region60
      $region59: #{self_preact_block_forward.6} parent=39 // pred_region
        %s853 = smul.u32 16, %s22
        %p854 = scmp.lt.s32.totalorder %s853, 15
        %s855 = scalar_select %p854, %s853, 15
        %s856 = smul.addr %s855, 8
        %s857 = scalar_lea.vmem %s5, %s856
      $region60: #{self_preact_block_forward.6} parent=39 // pred_fallthru
        _
      // Predicated region
      $region61: #{self_preact_block_forward.6} parent=39 // pred_check
        %p858 = pneg %p191
      $region62: #{self_preact_block_forward.6} parent=39 // pred_check_branch
        %860 = sbr.rel (%p858) target = $region64
      $region63: #{self_preact_block_forward.6} parent=39 // pred_region
        %p861 = scmp.lt.s32.totalorder %s22, 0
        %s862 = scalar_select %p861, %s22, 0
        %s863 = smul.addr %s862, 8
        %s864 = scalar_lea.vmem %s6, %s863
      $region64: #{self_preact_block_forward.6} parent=39 // pred_fallthru
        _
    $region40: #{self_preact_block_forward.6} parent=5 // pred_fallthru
      _
    %p865 = scmp.le.s32.totalorder 2, %s13
    // Predicated region
    $region65: #{self_preact_block_forward.6} parent=5 // pred_check
      %p866 = pneg %p865
    $region66: #{self_preact_block_forward.6} parent=5 // pred_check_branch
      %868 = sbr.rel (%p866) target = $region68
    $region67: #{self_preact_block_forward.6} parent=5 // pred_region
      %s869 = ssub.s32 %s13, 2
    $region68: #{self_preact_block_forward.6} parent=5 // pred_fallthru
      _
  $region6: #{self_preact_block_forward.6} parent=0 // loop_footer
    %s17 = sadd.s32 1, %s13
  $region7: #{self_preact_block_forward.6} parent=0 // loop_footer_branch
    %12 = sbr.rel target = $region3
  $region8: #{self_preact_block_forward.6} parent=0 // loop_exit
    _

// kernel: self_preact_block_forward.5
$region0: #{self_preact_block_forward.5}
  #allocation0 [shape = 'u32[]', space=smem, size = 0x4, offset = 0x4, fixed_abs, tag = 'smem constant byte address 0x4 - core index']
  #allocation1 [shape = 'u32[144,128]{1,0:T(1,128)}', space=vmem, size = 0x12000, scoped, tag = 'internal scratch']
  %s0 = inlined_call_operand.vmem [shape: f32[9,128,4], index: 0, kind: input, shape index: {}]
  %s1 = inlined_call_operand.vmem [shape: f32[9,4,4], index: 1, kind: input, shape index: {}]
  %s2 = inlined_call_operand.vmem [shape: f32[4,4], index: 2, kind: input, shape index: {}]
  %s3 = inlined_call_operand.vmem [shape: f32[1,4], index: 3, kind: input, shape index: {}]
  %s4 = inlined_call_operand.vmem [shape: f32[1,4], index: 4, kind: input, shape index: {}]
  %s5 = inlined_call_operand.vmem [shape: f32[128,4], index: 5, kind: output, shape index: {0}]
  %s6 = inlined_call_operand.vmem [shape: f32[128,4], index: 6, kind: output, shape index: {1}]
  %7 = xla_tuple %s5, %s6
  %s8 = sld [smem:[#allocation0]]
  $region73: #{self_preact_block_forward.5} parent=0
    _
  %s10 = ssub.s32 1, %s8
  %s11 = scalar_select 0, %s10, %s8
  loop: start=0, step=1, limit=11
  $region2: #{self_preact_block_forward.5} parent=0 // loop_pre_header
    _
  $region3: #{self_preact_block_forward.5} parent=0 // loop_header
    %s13 = sphi 0, %s17
    %p14 = scmp.ge.s32.totalorder %s13, 11
    %s20 = sphi 0, %s32
    %s21 = sphi 0, %s28
    %s22 = sphi 0, %s20
    %s23 = sphi 0, %s21
    %s24 = sphi 0, %s22
    %s25 = sphi 0, %s23
    %s37 = sphi 0, %s39
    %s40 = sphi 0, %s37
    %s41 = sphi 0, %s40
    %s57 = sphi 0, %s41
    %s61 = sphi 0, %s61
    %s63 = sphi 0, %s61
    %s64 = sphi 0, %s63
    %s78 = sphi 0, %s64
    %s82 = sphi 0, %s82
    %s84 = sphi 0, %s82
    %s85 = sphi 0, %s84
    %s99 = sphi 0, %s85
    %s103 = sphi 0, %s103
    %s105 = sphi 0, %s103
    %s106 = sphi 0, %s105
    %s120 = sphi 0, %s106
    %s124 = sphi 0, %s124
    %s126 = sphi 0, %s124
    %s127 = sphi 0, %s126
    %s141 = sphi 0, %s127
    %s147 = sphi 0, %s149
    %s150 = sphi 0, %s147
    %s151 = sphi 0, %s150
    %s167 = sphi 0, %s151
    %s173 = sphi 0, %s175
    %s176 = sphi 0, %s173
    %s177 = sphi 0, %s176
    %s193 = sphi 0, %s177
  $region4: #{self_preact_block_forward.5} parent=0 // loop_header_branch
    %16 = sbr.rel (%p14) target = $region8
  $region5: #{self_preact_block_forward.5} parent=0 // loop_body
    %s18 = ssub.s32 %s13, 1
    %s19 = ssub.s32 %s13, 2
    %s26 = sadd.s32 1, %s21
    %p27 = scmp.ge.s32.totalorder %s26, 9
    %s28 = scalar_select %p27, 0, %s26
    %s29 = sadd.s32 1, %s20
    %s30 = scalar_select %p27, %s29, %s20
    %p31 = scmp.ge.s32.totalorder %s30, 1
    %s32 = scalar_select %p31, 0, %s30
    %s33 = ssub.s32 %s21, %s28
    %s34 = ssub.s32 %s20, %s32
    %s35 = sor.u32 %s33, %s34
    %p36 = scmp.eq.s32.totalorder %s35, 0
    %s38 = sadd.s32 %s37, 1
    %s39 = scalar_select %p36, %s37, %s38
    %p42 = pneg %p36
    %p43 = scmp.eq.s32.totalorder %s13, 8
    %p44 = por %p42, %p43
    %p45 = scmp.ne.s32.totalorder %s37, %s40
    %p46 = scmp.eq.s32.totalorder %s13, 0
    %p47 = por %p45, %p46
    %p48 = scmp.ne.s32.totalorder %s37, %s40
    %p49 = scmp.eq.s32.totalorder %s18, 8
    %p50 = por %p48, %p49
    %p51 = scmp.ne.s32.totalorder %s40, %s41
    %p52 = scmp.eq.s32.totalorder %s18, 0
    %p53 = por %p51, %p52
    %p54 = scmp.ne.s32.totalorder %s40, %s41
    %p55 = scmp.eq.s32.totalorder %s19, 8
    %p56 = por %p54, %p55
    %p58 = scmp.ne.s32.totalorder %s41, %s57
    %p59 = scmp.eq.s32.totalorder %s19, 0
    %p60 = por %p58, %p59
    %s62 = sadd.s32 %s61, 1
    %p65 = scmp.eq.s32.totalorder %s13, 8
    %p66 = scmp.ne.s32.totalorder %s61, %s63
    %p67 = scmp.eq.s32.totalorder %s13, 0
    %p68 = por %p66, %p67
    %p69 = scmp.ne.s32.totalorder %s61, %s63
    %p70 = scmp.eq.s32.totalorder %s18, 8
    %p71 = por %p69, %p70
    %p72 = scmp.ne.s32.totalorder %s63, %s64
    %p73 = scmp.eq.s32.totalorder %s18, 0
    %p74 = por %p72, %p73
    %p75 = scmp.ne.s32.totalorder %s63, %s64
    %p76 = scmp.eq.s32.totalorder %s19, 8
    %p77 = por %p75, %p76
    %p79 = scmp.ne.s32.totalorder %s64, %s78
    %p80 = scmp.eq.s32.totalorder %s19, 0
    %p81 = por %p79, %p80
    %s83 = sadd.s32 %s82, 1
    %p86 = scmp.eq.s32.totalorder %s13, 8
    %p87 = scmp.ne.s32.totalorder %s82, %s84
    %p88 = scmp.eq.s32.totalorder %s13, 0
    %p89 = por %p87, %p88
    %p90 = scmp.ne.s32.totalorder %s82, %s84
    %p91 = scmp.eq.s32.totalorder %s18, 8
    %p92 = por %p90, %p91
    %p93 = scmp.ne.s32.totalorder %s84, %s85
    %p94 = scmp.eq.s32.totalorder %s18, 0
    %p95 = por %p93, %p94
    %p96 = scmp.ne.s32.totalorder %s84, %s85
    %p97 = scmp.eq.s32.totalorder %s19, 8
    %p98 = por %p96, %p97
    %p100 = scmp.ne.s32.totalorder %s85, %s99
    %p101 = scmp.eq.s32.totalorder %s19, 0
    %p102 = por %p100, %p101
    %s104 = sadd.s32 %s103, 1
    %p107 = scmp.eq.s32.totalorder %s13, 8
    %p108 = scmp.ne.s32.totalorder %s103, %s105
    %p109 = scmp.eq.s32.totalorder %s13, 0
    %p110 = por %p108, %p109
    %p111 = scmp.ne.s32.totalorder %s103, %s105
    %p112 = scmp.eq.s32.totalorder %s18, 8
    %p113 = por %p111, %p112
    %p114 = scmp.ne.s32.totalorder %s105, %s106
    %p115 = scmp.eq.s32.totalorder %s18, 0
    %p116 = por %p114, %p115
    %p117 = scmp.ne.s32.totalorder %s105, %s106
    %p118 = scmp.eq.s32.totalorder %s19, 8
    %p119 = por %p117, %p118
    %p121 = scmp.ne.s32.totalorder %s106, %s120
    %p122 = scmp.eq.s32.totalorder %s19, 0
    %p123 = por %p121, %p122
    %s125 = sadd.s32 %s124, 1
    %p128 = scmp.eq.s32.totalorder %s13, 8
    %p129 = scmp.ne.s32.totalorder %s124, %s126
    %p130 = scmp.eq.s32.totalorder %s13, 0
    %p131 = por %p129, %p130
    %p132 = scmp.ne.s32.totalorder %s124, %s126
    %p133 = scmp.eq.s32.totalorder %s18, 8
    %p134 = por %p132, %p133
    %p135 = scmp.ne.s32.totalorder %s126, %s127
    %p136 = scmp.eq.s32.totalorder %s18, 0
    %p137 = por %p135, %p136
    %p138 = scmp.ne.s32.totalorder %s126, %s127
    %p139 = scmp.eq.s32.totalorder %s19, 8
    %p140 = por %p138, %p139
    %p142 = scmp.ne.s32.totalorder %s127, %s141
    %p143 = scmp.eq.s32.totalorder %s19, 0
    %p144 = por %p142, %p143
    %s145 = ssub.s32 %s20, %s32
    %p146 = scmp.eq.s32.totalorder %s145, 0
    %s148 = sadd.s32 %s147, 1
    %s149 = scalar_select %p146, %s147, %s148
    %p152 = pneg %p146
    %p153 = scmp.eq.s32.totalorder %s13, 8
    %p154 = por %p152, %p153
    %p155 = scmp.ne.s32.totalorder %s147, %s150
    %p156 = scmp.eq.s32.totalorder %s13, 0
    %p157 = por %p155, %p156
    %p158 = scmp.ne.s32.totalorder %s147, %s150
    %p159 = scmp.eq.s32.totalorder %s18, 8
    %p160 = por %p158, %p159
    %p161 = scmp.ne.s32.totalorder %s150, %s151
    %p162 = scmp.eq.s32.totalorder %s18, 0
    %p163 = por %p161, %p162
    %p164 = scmp.ne.s32.totalorder %s150, %s151
    %p165 = scmp.eq.s32.totalorder %s19, 8
    %p166 = por %p164, %p165
    %p168 = scmp.ne.s32.totalorder %s151, %s167
    %p169 = scmp.eq.s32.totalorder %s19, 0
    %p170 = por %p168, %p169
    %s171 = ssub.s32 %s20, %s32
    %p172 = scmp.eq.s32.totalorder %s171, 0
    %s174 = sadd.s32 %s173, 1
    %s175 = scalar_select %p172, %s173, %s174
    %p178 = pneg %p172
    %p179 = scmp.eq.s32.totalorder %s13, 8
    %p180 = por %p178, %p179
    %p181 = scmp.ne.s32.totalorder %s173, %s176
    %p182 = scmp.eq.s32.totalorder %s13, 0
    %p183 = por %p181, %p182
    %p184 = scmp.ne.s32.totalorder %s173, %s176
    %p185 = scmp.eq.s32.totalorder %s18, 8
    %p186 = por %p184, %p185
    %p187 = scmp.ne.s32.totalorder %s176, %s177
    %p188 = scmp.eq.s32.totalorder %s18, 0
    %p189 = por %p187, %p188
    %p190 = scmp.ne.s32.totalorder %s176, %s177
    %p191 = scmp.eq.s32.totalorder %s19, 8
    %p192 = por %p190, %p191
    %p194 = scmp.ne.s32.totalorder %s177, %s193
    %p195 = scmp.eq.s32.totalorder %s19, 0
    %p196 = por %p194, %p195
    %p197 = scmp.le.s32.totalorder 1, %s13
    %p198 = scmp.lt.s32.totalorder %s13, 10
    %p199 = pnand %p197, %p198
    %p200 = pneg %p199
    // Predicated region
    $region9: #{self_preact_block_forward.5} parent=5 // pred_check
      _
    $region10: #{self_preact_block_forward.5} parent=5 // pred_check_branch
      %202 = sbr.rel (%p199) target = $region12
    $region11: #{self_preact_block_forward.5} parent=5 // pred_region
      %s203 = ssub.s32 %s13, 1
      // Predicated region
      $region13: #{self_preact_block_forward.5} parent=11 // pred_check
        %p204 = pneg %p74
      $region14: #{self_preact_block_forward.5} parent=11 // pred_check_branch
        %206 = sbr.rel (%p204) target = $region16
      $region15: #{self_preact_block_forward.5} parent=11 // pred_region
        _
      $region16: #{self_preact_block_forward.5} parent=11 // pred_fallthru
        _
      // Predicated region
      $region17: #{self_preact_block_forward.5} parent=11 // pred_check
        %p207 = pneg %p95
      $region18: #{self_preact_block_forward.5} parent=11 // pred_check_branch
        %209 = sbr.rel (%p207) target = $region20
      $region19: #{self_preact_block_forward.5} parent=11 // pred_region
        _
      $region20: #{self_preact_block_forward.5} parent=11 // pred_fallthru
        _
      // Predicated region
      $region21: #{self_preact_block_forward.5} parent=11 // pred_check
        %p210 = pneg %p116
      $region22: #{self_preact_block_forward.5} parent=11 // pred_check_branch
        %212 = sbr.rel (%p210) target = $region24
      $region23: #{self_preact_block_forward.5} parent=11 // pred_region
        _
      $region24: #{self_preact_block_forward.5} parent=11 // pred_fallthru
        _
      // Predicated region
      $region25: #{self_preact_block_forward.5} parent=11 // pred_check
        %p213 = pneg %p137
      $region26: #{self_preact_block_forward.5} parent=11 // pred_check_branch
        %215 = sbr.rel (%p213) target = $region28
      $region27: #{self_preact_block_forward.5} parent=11 // pred_region
        _
      $region28: #{self_preact_block_forward.5} parent=11 // pred_fallthru
        _
    $region12: #{self_preact_block_forward.5} parent=5 // pred_fallthru
      _
    %p216 = scmp.lt.s32.totalorder %s13, 9
    // Predicated region
    $region29: #{self_preact_block_forward.5} parent=5 // pred_check
      %p217 = pneg %p216
    $region30: #{self_preact_block_forward.5} parent=5 // pred_check_branch
      %219 = sbr.rel (%p217) target = $region32
    $region31: #{self_preact_block_forward.5} parent=5 // pred_region
      // Predicated region
      $region33: #{self_preact_block_forward.5} parent=31 // pred_check
        %p220 = pneg %p47
      $region34: #{self_preact_block_forward.5} parent=31 // pred_check_branch
        %222 = sbr.rel (%p220) target = $region36
      $region35: #{self_preact_block_forward.5} parent=31 // pred_region
        %s223 = smul.u32 16, %s20
        %p224 = scmp.lt.s32.totalorder %s21, 8
        %s225 = scalar_select %p224, %s21, 8
        %p226 = scmp.lt.s32.totalorder %s223, 15
        %s227 = scalar_select %p226, %s223, 15
        %s228 = smul.addr %s225, 16
        %s229 = sadd.s32 %s227, %s228
        %s230 = smul.addr %s229, 8
        %s231 = scalar_lea.vmem %s0, %s230
        %s232 = smul.u32 16, %s20
      $region36: #{self_preact_block_forward.5} parent=31 // pred_fallthru
        _
    $region32: #{self_preact_block_forward.5} parent=5 // pred_fallthru
      _
    %p233 = scmp.le.s32.totalorder 1, %s13
    %p234 = scmp.lt.s32.totalorder %s13, 10
    %p235 = pnand %p233, %p234
    %p236 = pneg %p235
    // Predicated region
    $region37: #{self_preact_block_forward.5} parent=5 // pred_check
      _
    $region38: #{self_preact_block_forward.5} parent=5 // pred_check_branch
      %238 = sbr.rel (%p235) target = $region40
    $region39: #{self_preact_block_forward.5} parent=5 // pred_region
      %s239 = ssub.s32 %s13, 1
      %s240 = smul.u32 16, %s22
      %p241 = scmp.lt.s32.totalorder %s23, 8
      %s242 = scalar_select %p241, %s23, 8
      %p243 = scmp.lt.s32.totalorder %s240, 15
      %s244 = scalar_select %p243, %s240, 15
      %s245 = smul.addr %s242, 16
      %s246 = sadd.s32 %s244, %s245
      %s247 = smul.addr %s246, 8
      %s248 = scalar_lea.vmem %s0, %s247
      %p249 = pneg %p53
      %p250 = pneg %p50
      %p251 = pneg %p74
      %p252 = pneg %p71
      %p253 = pneg %p95
      %p254 = pneg %p92
      %p255 = pneg %p116
      %p256 = pneg %p113
      %p257 = pneg %p137
      %p258 = pneg %p134
      %p259 = pneg %p163
      %p260 = pneg %p160
      %s261 = smul.u32 16, %s22
      %p262 = scmp.lt.s32.totalorder %s261, 15
      %s263 = scalar_select %p262, %s261, 15
      %s264 = smul.addr %s263, 8
      %s265 = scalar_lea.vmem %s5, %s264
      %p266 = pneg %p189
      %p267 = pneg %p186
      %s268 = smul.u32 16, %s22
      %p269 = scmp.lt.s32.totalorder %s268, 15
      %s270 = scalar_select %p269, %s268, 15
      %s271 = smul.addr %s270, 8
      %s272 = scalar_lea.vmem %s6, %s271
      %s273 = smul.u32 16, %s22
      %p274 = scmp.lt.s32.totalorder %s23, 8
      %s275 = scalar_select %p274, %s23, 8
      %p276 = scmp.lt.s32.totalorder %s273, 15
      %s277 = scalar_select %p276, %s273, 15
      %s278 = smul.addr %s275, 16
      %s279 = sadd.s32 %s277, %s278
      %s280 = smul.addr %s279, 8
      %s281 = scalar_lea.vmem %s0, %s280
      %s282 = smul.u32 16, %s22
      %s283 = smul.u32 16, %s22
      %p284 = scmp.lt.s32.totalorder %s283, 15
      %s285 = scalar_select %p284, %s283, 15
      %s286 = smul.addr %s285, 8
      %s287 = scalar_lea.vmem %s5, %s286
      %s288 = smul.u32 16, %s22
      %s289 = smul.u32 16, %s22
      %p290 = scmp.lt.s32.totalorder %s289, 15
      %s291 = scalar_select %p290, %s289, 15
      %s292 = smul.addr %s291, 8
      %s293 = scalar_lea.vmem %s6, %s292
      %s294 = smul.u32 16, %s22
      %p295 = scmp.eq.s32.totalorder %s23, 0
      // Predicated region
      $region41: #{self_preact_block_forward.5} parent=39 // pred_check
        %p296 = pneg %p295
      $region42: #{self_preact_block_forward.5} parent=39 // pred_check_branch
        %298 = sbr.rel (%p296) target = $region44
      $region43: #{self_preact_block_forward.5} parent=39 // pred_region
        %vm299 = vcmask 31744
        %300 = vst.msk [vmem:[%s287] sm:$0xff] %vm299, 0.0
        %301 = vst.msk [vmem:[%s287 + $0x8] sm:$0xff] %vm299, 0.0
        %302 = vst.msk [vmem:[%s287 + $0x10] sm:$0xff] %vm299, 0.0
        %303 = vst.msk [vmem:[%s287 + $0x18] sm:$0xff] %vm299, 0.0
        %304 = vst.msk [vmem:[%s287 + $0x20] sm:$0xff] %vm299, 0.0
        %305 = vst.msk [vmem:[%s287 + $0x28] sm:$0xff] %vm299, 0.0
        %306 = vst.msk [vmem:[%s287 + $0x30] sm:$0xff] %vm299, 0.0
        %307 = vst.msk [vmem:[%s287 + $0x38] sm:$0xff] %vm299, 0.0
        %308 = vst.msk [vmem:[%s287 + $0x40] sm:$0xff] %vm299, 0.0
        %309 = vst.msk [vmem:[%s287 + $0x48] sm:$0xff] %vm299, 0.0
        %310 = vst.msk [vmem:[%s287 + $0x50] sm:$0xff] %vm299, 0.0
        %311 = vst.msk [vmem:[%s287 + $0x58] sm:$0xff] %vm299, 0.0
        %312 = vst.msk [vmem:[%s287 + $0x60] sm:$0xff] %vm299, 0.0
        %313 = vst.msk [vmem:[%s287 + $0x68] sm:$0xff] %vm299, 0.0
        %314 = vst.msk [vmem:[%s287 + $0x70] sm:$0xff] %vm299, 0.0
        %315 = vst.msk [vmem:[%s287 + $0x78] sm:$0xff] %vm299, 0.0
      $region44: #{self_preact_block_forward.5} parent=39 // pred_fallthru
        _
      %v316 = vld [vmem:[%s281] sm:$0xff]
      %v317 = vld [vmem:[%s281 + $0x8] sm:$0xff]
      %v318 = vld [vmem:[%s281 + $0x10] sm:$0xff]
      %v319 = vld [vmem:[%s281 + $0x18] sm:$0xff]
      %v320 = vld [vmem:[%s281 + $0x20] sm:$0xff]
      %v321 = vld [vmem:[%s281 + $0x28] sm:$0xff]
      %v322 = vld [vmem:[%s281 + $0x30] sm:$0xff]
      %v323 = vld [vmem:[%s281 + $0x38] sm:$0xff]
      %v324 = vld [vmem:[%s281 + $0x40] sm:$0xff]
      %v325 = vld [vmem:[%s281 + $0x48] sm:$0xff]
      %v326 = vld [vmem:[%s281 + $0x50] sm:$0xff]
      %v327 = vld [vmem:[%s281 + $0x58] sm:$0xff]
      %v328 = vld [vmem:[%s281 + $0x60] sm:$0xff]
      %v329 = vld [vmem:[%s281 + $0x68] sm:$0xff]
      %v330 = vld [vmem:[%s281 + $0x70] sm:$0xff]
      %v331 = vld [vmem:[%s281 + $0x78] sm:$0xff]
      %v332 = vld [vmem:[%s287] sm:$0xff]
      %v333 = vld [vmem:[%s287 + $0x8] sm:$0xff]
      %v334 = vld [vmem:[%s287 + $0x10] sm:$0xff]
      %v335 = vld [vmem:[%s287 + $0x18] sm:$0xff]
      %v336 = vld [vmem:[%s287 + $0x20] sm:$0xff]
      %v337 = vld [vmem:[%s287 + $0x28] sm:$0xff]
      %v338 = vld [vmem:[%s287 + $0x30] sm:$0xff]
      %v339 = vld [vmem:[%s287 + $0x38] sm:$0xff]
      %v340 = vld [vmem:[%s287 + $0x40] sm:$0xff]
      %v341 = vld [vmem:[%s287 + $0x48] sm:$0xff]
      %v342 = vld [vmem:[%s287 + $0x50] sm:$0xff]
      %v343 = vld [vmem:[%s287 + $0x58] sm:$0xff]
      %v344 = vld [vmem:[%s287 + $0x60] sm:$0xff]
      %v345 = vld [vmem:[%s287 + $0x68] sm:$0xff]
      %v346 = vld [vmem:[%s287 + $0x70] sm:$0xff]
      %v347 = vld [vmem:[%s287 + $0x78] sm:$0xff]
      %s348 = smul.u32 %s23, 4
      %s349 = scalar_lea.vmem %s1, %s348
      %v350 = vld [vmem:[%s349] sm:$0xf]
      %vm351 = vcmask 31744
      %v353 = vsel %vm351, %v316, 0
      %v356 = vsel %vm351, %v317, 0
      %v359 = vsel %vm351, %v318, 0
      %v362 = vsel %vm351, %v319, 0
      %v365 = vsel %vm351, %v320, 0
      %v368 = vsel %vm351, %v321, 0
      %v371 = vsel %vm351, %v322, 0
      %v374 = vsel %vm351, %v323, 0
      %v377 = vsel %vm351, %v324, 0
      %v380 = vsel %vm351, %v325, 0
      %v383 = vsel %vm351, %v326, 0
      %v386 = vsel %vm351, %v327, 0
      %v389 = vsel %vm351, %v328, 0
      %v392 = vsel %vm351, %v329, 0
      %v395 = vsel %vm351, %v330, 0
      %v398 = vsel %vm351, %v331, 0
      %vm400 = vcmask 1043456
      %v402 = vsel %vm400, %v350, 0
      %404 = vmatprep.subr.mxu0 0.0
      %405 = vmatpush1.msra.mxu0 0.0
      %406 = vmatprep.subr.mxu0 0.0
      %407 = vmatpush1.msra.mxu0 0.0
      %408 = vmatprep.subr.mxu0 0.0
      %409 = vmatpush1.msra.mxu0 0.0
      %410 = vmatprep.subr.mxu0 0.0
      %411 = vmatpush1.msra.mxu0 0.0
      %412 = vmatprep.subr.mxu0 0.0
      %413 = vmatpush1.msra.mxu0 0.0
      %414 = vmatprep.subr.mxu0 0.0
      %415 = vmatpush1.msra.mxu0 0.0
      %416 = vmatprep.subr.mxu0 0.0
      %417 = vmatpush1.msra.mxu0 0.0
      %418 = vmatprep.subr.mxu0 0.0
      %419 = vmatpush1.msra.mxu0 0.0
      %420 = vmatprep.subr.mxu0 0.0
      %421 = vmatpush1.msra.mxu0 0.0
      %422 = vmatprep.subr.mxu0 0.0
      %423 = vmatpush1.msra.mxu0 0.0
      %424 = vmatprep.subr.mxu0 0.0
      %425 = vmatpush1.msra.mxu0 0.0
      %426 = vmatprep.subr.mxu0 0.0
      %427 = vmatpush1.msra.mxu0 0.0
      %428 = vmatprep.subr.mxu0 0.0
      %429 = vmatpush1.msra.mxu0 0.0
      %430 = vmatprep.subr.mxu0 0.0
      %431 = vmatpush1.msra.mxu0 0.0
      %432 = vmatprep.subr.mxu0 0.0
      %433 = vmatpush1.msra.mxu0 0.0
      %434 = vmatprep.subr.mxu0 0.0
      %435 = vmatpush1.msra.mxu0 %v402
      %436 = vmatprep.subr.mxu0 0.0
      %437 = vmatpush2.msra.mxu0 0.0
      %438 = vmatprep.subr.mxu0 0.0
      %439 = vmatpush2.msra.mxu0 0.0
      %440 = vmatprep.subr.mxu0 0.0
      %441 = vmatpush2.msra.mxu0 0.0
      %442 = vmatprep.subr.mxu0 0.0
      %443 = vmatpush2.msra.mxu0 0.0
      %444 = vmatprep.subr.mxu0 0.0
      %445 = vmatpush2.msra.mxu0 0.0
      %446 = vmatprep.subr.mxu0 0.0
      %447 = vmatpush2.msra.mxu0 0.0
      %448 = vmatprep.subr.mxu0 0.0
      %449 = vmatpush2.msra.mxu0 0.0
      %450 = vmatprep.subr.mxu0 0.0
      %451 = vmatpush2.msra.mxu0 0.0
      %452 = vmatprep.subr.mxu0 0.0
      %453 = vmatpush2.msra.mxu0 0.0
      %454 = vmatprep.subr.mxu0 0.0
      %455 = vmatpush2.msra.mxu0 0.0
      %456 = vmatprep.subr.mxu0 0.0
      %457 = vmatpush2.msra.mxu0 0.0
      %458 = vmatprep.subr.mxu0 0.0
      %459 = vmatpush2.msra.mxu0 0.0
      %460 = vmatprep.subr.mxu0 0.0
      %461 = vmatpush2.msra.mxu0 0.0
      %462 = vmatprep.subr.mxu0 0.0
      %463 = vmatpush2.msra.mxu0 0.0
      %464 = vmatprep.subr.mxu0 0.0
      %465 = vmatpush2.msra.mxu0 0.0
      %466 = vmatprep.subr.mxu0 0.0
      %467 = vmatpush2.msra.mxu0 0.0
      %468 = vmatprep.mubr.f32.mxu0 0.0
      %469 = vmatmul.mubr.f32.gmra.mxu0 %v353
      %v470 = vpop.f32.mrf.mxu0
      %v471 = vadd.f32 0.0, %v470
      %v472 = vpop.f32.mrf.mxu0
      %473 = vmatprep.mubr.f32.mxu0 0.0
      %474 = vmatmul.mubr.f32.gmra.mxu0 %v356
      %v475 = vpop.f32.mrf.mxu0
      %v476 = vadd.f32 0.0, %v475
      %v477 = vpop.f32.mrf.mxu0
      %478 = vmatprep.mubr.f32.mxu0 0.0
      %479 = vmatmul.mubr.f32.gmra.mxu0 %v359
      %v480 = vpop.f32.mrf.mxu0
      %v481 = vadd.f32 0.0, %v480
      %v482 = vpop.f32.mrf.mxu0
      %483 = vmatprep.mubr.f32.mxu0 0.0
      %484 = vmatmul.mubr.f32.gmra.mxu0 %v362
      %v485 = vpop.f32.mrf.mxu0
      %v486 = vadd.f32 0.0, %v485
      %v487 = vpop.f32.mrf.mxu0
      %488 = vmatprep.mubr.f32.mxu0 0.0
      %489 = vmatmul.mubr.f32.gmra.mxu0 %v365
      %v490 = vpop.f32.mrf.mxu0
      %v491 = vadd.f32 0.0, %v490
      %v492 = vpop.f32.mrf.mxu0
      %493 = vmatprep.mubr.f32.mxu0 0.0
      %494 = vmatmul.mubr.f32.gmra.mxu0 %v368
      %v495 = vpop.f32.mrf.mxu0
      %v496 = vadd.f32 0.0, %v495
      %v497 = vpop.f32.mrf.mxu0
      %498 = vmatprep.mubr.f32.mxu0 0.0
      %499 = vmatmul.mubr.f32.gmra.mxu0 %v371
      %v500 = vpop.f32.mrf.mxu0
      %v501 = vadd.f32 0.0, %v500
      %v502 = vpop.f32.mrf.mxu0
      %503 = vmatprep.mubr.f32.mxu0 0.0
      %504 = vmatmul.mubr.f32.gmra.mxu0 %v374
      %v505 = vpop.f32.mrf.mxu0
      %v506 = vadd.f32 0.0, %v505
      %v507 = vpop.f32.mrf.mxu0
      %508 = vmatprep.mubr.f32.mxu0 0.0
      %509 = vmatmul.mubr.f32.gmra.mxu0 %v377
      %v510 = vpop.f32.mrf.mxu0
      %v511 = vadd.f32 0.0, %v510
      %v512 = vpop.f32.mrf.mxu0
      %513 = vmatprep.mubr.f32.mxu0 0.0
      %514 = vmatmul.mubr.f32.gmra.mxu0 %v380
      %v515 = vpop.f32.mrf.mxu0
      %v516 = vadd.f32 0.0, %v515
      %v517 = vpop.f32.mrf.mxu0
      %518 = vmatprep.mubr.f32.mxu0 0.0
      %519 = vmatmul.mubr.f32.gmra.mxu0 %v383
      %v520 = vpop.f32.mrf.mxu0
      %v521 = vadd.f32 0.0, %v520
      %v522 = vpop.f32.mrf.mxu0
      %523 = vmatprep.mubr.f32.mxu0 0.0
      %524 = vmatmul.mubr.f32.gmra.mxu0 %v386
      %v525 = vpop.f32.mrf.mxu0
      %v526 = vadd.f32 0.0, %v525
      %v527 = vpop.f32.mrf.mxu0
      %528 = vmatprep.mubr.f32.mxu0 0.0
      %529 = vmatmul.mubr.f32.gmra.mxu0 %v389
      %v530 = vpop.f32.mrf.mxu0
      %v531 = vadd.f32 0.0, %v530
      %v532 = vpop.f32.mrf.mxu0
      %533 = vmatprep.mubr.f32.mxu0 0.0
      %534 = vmatmul.mubr.f32.gmra.mxu0 %v392
      %v535 = vpop.f32.mrf.mxu0
      %v536 = vadd.f32 0.0, %v535
      %v537 = vpop.f32.mrf.mxu0
      %538 = vmatprep.mubr.f32.mxu0 0.0
      %539 = vmatmul.mubr.f32.gmra.mxu0 %v395
      %v540 = vpop.f32.mrf.mxu0
      %v541 = vadd.f32 0.0, %v540
      %v542 = vpop.f32.mrf.mxu0
      %543 = vmatprep.mubr.f32.mxu0 0.0
      %544 = vmatmul.mubr.f32.gmra.mxu0 %v398
      %v545 = vpop.f32.mrf.mxu0
      %v546 = vadd.f32 0.0, %v545
      %v547 = vpop.f32.mrf.mxu0
      %548 = vdwg.mxu0
      %v549 = vadd.f32 %v332, %v471
      %v550 = vadd.f32 %v333, %v476
      %v551 = vadd.f32 %v334, %v481
      %v552 = vadd.f32 %v335, %v486
      %v553 = vadd.f32 %v336, %v491
      %v554 = vadd.f32 %v337, %v496
      %v555 = vadd.f32 %v338, %v501
      %v556 = vadd.f32 %v339, %v506
      %v557 = vadd.f32 %v340, %v511
      %v558 = vadd.f32 %v341, %v516
      %v559 = vadd.f32 %v342, %v521
      %v560 = vadd.f32 %v343, %v526
      %v561 = vadd.f32 %v344, %v531
      %v562 = vadd.f32 %v345, %v536
      %v563 = vadd.f32 %v346, %v541
      %v564 = vadd.f32 %v347, %v546
      %565 = vst.msk [vmem:[%s287] sm:$0xff] %vm351, %v549
      %566 = vst.msk [vmem:[%s287 + $0x8] sm:$0xff] %vm351, %v550
      %567 = vst.msk [vmem:[%s287 + $0x10] sm:$0xff] %vm351, %v551
      %568 = vst.msk [vmem:[%s287 + $0x18] sm:$0xff] %vm351, %v552
      %569 = vst.msk [vmem:[%s287 + $0x20] sm:$0xff] %vm351, %v553
      %570 = vst.msk [vmem:[%s287 + $0x28] sm:$0xff] %vm351, %v554
      %571 = vst.msk [vmem:[%s287 + $0x30] sm:$0xff] %vm351, %v555
      %572 = vst.msk [vmem:[%s287 + $0x38] sm:$0xff] %vm351, %v556
      %573 = vst.msk [vmem:[%s287 + $0x40] sm:$0xff] %vm351, %v557
      %574 = vst.msk [vmem:[%s287 + $0x48] sm:$0xff] %vm351, %v558
      %575 = vst.msk [vmem:[%s287 + $0x50] sm:$0xff] %vm351, %v559
      %576 = vst.msk [vmem:[%s287 + $0x58] sm:$0xff] %vm351, %v560
      %577 = vst.msk [vmem:[%s287 + $0x60] sm:$0xff] %vm351, %v561
      %578 = vst.msk [vmem:[%s287 + $0x68] sm:$0xff] %vm351, %v562
      %579 = vst.msk [vmem:[%s287 + $0x70] sm:$0xff] %vm351, %v563
      %580 = vst.msk [vmem:[%s287 + $0x78] sm:$0xff] %vm351, %v564
      %p581 = scmp.eq.s32.totalorder %s23, 4
      // Predicated region
      $region45: #{self_preact_block_forward.5} parent=39 // pred_check
        %p582 = pneg %p581
      $region46: #{self_preact_block_forward.5} parent=39 // pred_check_branch
        %584 = sbr.rel (%p582) target = $region48
      $region47: #{self_preact_block_forward.5} parent=39 // pred_region
        %v585 = vld [vmem:[%s2] sm:$0xf]
        %v587 = vsel %vm400, %v585, 0
        %589 = vmatprep.subr.mxu0 0.0
        %590 = vmatpush1.msra.mxu0 0.0
        %591 = vmatprep.subr.mxu0 0.0
        %592 = vmatpush1.msra.mxu0 0.0
        %593 = vmatprep.subr.mxu0 0.0
        %594 = vmatpush1.msra.mxu0 0.0
        %595 = vmatprep.subr.mxu0 0.0
        %596 = vmatpush1.msra.mxu0 0.0
        %597 = vmatprep.subr.mxu0 0.0
        %598 = vmatpush1.msra.mxu0 0.0
        %599 = vmatprep.subr.mxu0 0.0
        %600 = vmatpush1.msra.mxu0 0.0
        %601 = vmatprep.subr.mxu0 0.0
        %602 = vmatpush1.msra.mxu0 0.0
        %603 = vmatprep.subr.mxu0 0.0
        %604 = vmatpush1.msra.mxu0 0.0
        %605 = vmatprep.subr.mxu0 0.0
        %606 = vmatpush1.msra.mxu0 0.0
        %607 = vmatprep.subr.mxu0 0.0
        %608 = vmatpush1.msra.mxu0 0.0
        %609 = vmatprep.subr.mxu0 0.0
        %610 = vmatpush1.msra.mxu0 0.0
        %611 = vmatprep.subr.mxu0 0.0
        %612 = vmatpush1.msra.mxu0 0.0
        %613 = vmatprep.subr.mxu0 0.0
        %614 = vmatpush1.msra.mxu0 0.0
        %615 = vmatprep.subr.mxu0 0.0
        %616 = vmatpush1.msra.mxu0 0.0
        %617 = vmatprep.subr.mxu0 0.0
        %618 = vmatpush1.msra.mxu0 0.0
        %619 = vmatprep.subr.mxu0 0.0
        %620 = vmatpush1.msra.mxu0 %v587
        %621 = vmatprep.subr.mxu0 0.0
        %622 = vmatpush2.msra.mxu0 0.0
        %623 = vmatprep.subr.mxu0 0.0
        %624 = vmatpush2.msra.mxu0 0.0
        %625 = vmatprep.subr.mxu0 0.0
        %626 = vmatpush2.msra.mxu0 0.0
        %627 = vmatprep.subr.mxu0 0.0
        %628 = vmatpush2.msra.mxu0 0.0
        %629 = vmatprep.subr.mxu0 0.0
        %630 = vmatpush2.msra.mxu0 0.0
        %631 = vmatprep.subr.mxu0 0.0
        %632 = vmatpush2.msra.mxu0 0.0
        %633 = vmatprep.subr.mxu0 0.0
        %634 = vmatpush2.msra.mxu0 0.0
        %635 = vmatprep.subr.mxu0 0.0
        %636 = vmatpush2.msra.mxu0 0.0
        %637 = vmatprep.subr.mxu0 0.0
        %638 = vmatpush2.msra.mxu0 0.0
        %639 = vmatprep.subr.mxu0 0.0
        %640 = vmatpush2.msra.mxu0 0.0
        %641 = vmatprep.subr.mxu0 0.0
        %642 = vmatpush2.msra.mxu0 0.0
        %643 = vmatprep.subr.mxu0 0.0
        %644 = vmatpush2.msra.mxu0 0.0
        %645 = vmatprep.subr.mxu0 0.0
        %646 = vmatpush2.msra.mxu0 0.0
        %647 = vmatprep.subr.mxu0 0.0
        %648 = vmatpush2.msra.mxu0 0.0
        %649 = vmatprep.subr.mxu0 0.0
        %650 = vmatpush2.msra.mxu0 0.0
        %651 = vmatprep.subr.mxu0 0.0
        %652 = vmatpush2.msra.mxu0 0.0
        %653 = vmatprep.mubr.f32.mxu0 0.0
        %654 = vmatmul.mubr.f32.gmra.mxu0 %v353
        %v655 = vpop.f32.mrf.mxu0
        %v656 = vadd.f32 0.0, %v655
        %v657 = vpop.f32.mrf.mxu0
        %658 = vmatprep.mubr.f32.mxu0 0.0
        %659 = vmatmul.mubr.f32.gmra.mxu0 %v356
        %v660 = vpop.f32.mrf.mxu0
        %v661 = vadd.f32 0.0, %v660
        %v662 = vpop.f32.mrf.mxu0
        %663 = vmatprep.mubr.f32.mxu0 0.0
        %664 = vmatmul.mubr.f32.gmra.mxu0 %v359
        %v665 = vpop.f32.mrf.mxu0
        %v666 = vadd.f32 0.0, %v665
        %v667 = vpop.f32.mrf.mxu0
        %668 = vmatprep.mubr.f32.mxu0 0.0
        %669 = vmatmul.mubr.f32.gmra.mxu0 %v362
        %v670 = vpop.f32.mrf.mxu0
        %v671 = vadd.f32 0.0, %v670
        %v672 = vpop.f32.mrf.mxu0
        %673 = vmatprep.mubr.f32.mxu0 0.0
        %674 = vmatmul.mubr.f32.gmra.mxu0 %v365
        %v675 = vpop.f32.mrf.mxu0
        %v676 = vadd.f32 0.0, %v675
        %v677 = vpop.f32.mrf.mxu0
        %678 = vmatprep.mubr.f32.mxu0 0.0
        %679 = vmatmul.mubr.f32.gmra.mxu0 %v368
        %v680 = vpop.f32.mrf.mxu0
        %v681 = vadd.f32 0.0, %v680
        %v682 = vpop.f32.mrf.mxu0
        %683 = vmatprep.mubr.f32.mxu0 0.0
        %684 = vmatmul.mubr.f32.gmra.mxu0 %v371
        %v685 = vpop.f32.mrf.mxu0
        %v686 = vadd.f32 0.0, %v685
        %v687 = vpop.f32.mrf.mxu0
        %688 = vmatprep.mubr.f32.mxu0 0.0
        %689 = vmatmul.mubr.f32.gmra.mxu0 %v374
        %v690 = vpop.f32.mrf.mxu0
        %v691 = vadd.f32 0.0, %v690
        %v692 = vpop.f32.mrf.mxu0
        %693 = vmatprep.mubr.f32.mxu0 0.0
        %694 = vmatmul.mubr.f32.gmra.mxu0 %v377
        %v695 = vpop.f32.mrf.mxu0
        %v696 = vadd.f32 0.0, %v695
        %v697 = vpop.f32.mrf.mxu0
        %698 = vmatprep.mubr.f32.mxu0 0.0
        %699 = vmatmul.mubr.f32.gmra.mxu0 %v380
        %v700 = vpop.f32.mrf.mxu0
        %v701 = vadd.f32 0.0, %v700
        %v702 = vpop.f32.mrf.mxu0
        %703 = vmatprep.mubr.f32.mxu0 0.0
        %704 = vmatmul.mubr.f32.gmra.mxu0 %v383
        %v705 = vpop.f32.mrf.mxu0
        %v706 = vadd.f32 0.0, %v705
        %v707 = vpop.f32.mrf.mxu0
        %708 = vmatprep.mubr.f32.mxu0 0.0
        %709 = vmatmul.mubr.f32.gmra.mxu0 %v386
        %v710 = vpop.f32.mrf.mxu0
        %v711 = vadd.f32 0.0, %v710
        %v712 = vpop.f32.mrf.mxu0
        %713 = vmatprep.mubr.f32.mxu0 0.0
        %714 = vmatmul.mubr.f32.gmra.mxu0 %v389
        %v715 = vpop.f32.mrf.mxu0
        %v716 = vadd.f32 0.0, %v715
        %v717 = vpop.f32.mrf.mxu0
        %718 = vmatprep.mubr.f32.mxu0 0.0
        %719 = vmatmul.mubr.f32.gmra.mxu0 %v392
        %v720 = vpop.f32.mrf.mxu0
        %v721 = vadd.f32 0.0, %v720
        %v722 = vpop.f32.mrf.mxu0
        %723 = vmatprep.mubr.f32.mxu0 0.0
        %724 = vmatmul.mubr.f32.gmra.mxu0 %v395
        %v725 = vpop.f32.mrf.mxu0
        %v726 = vadd.f32 0.0, %v725
        %v727 = vpop.f32.mrf.mxu0
        %728 = vmatprep.mubr.f32.mxu0 0.0
        %729 = vmatmul.mubr.f32.gmra.mxu0 %v398
        %v730 = vpop.f32.mrf.mxu0
        %v731 = vadd.f32 0.0, %v730
        %v732 = vpop.f32.mrf.mxu0
        %733 = vdwg.mxu0
        %734 = vst.msk [vmem:[%s293] sm:$0xff] %vm351, %v656
        %735 = vst.msk [vmem:[%s293 + $0x8] sm:$0xff] %vm351, %v661
        %736 = vst.msk [vmem:[%s293 + $0x10] sm:$0xff] %vm351, %v666
        %737 = vst.msk [vmem:[%s293 + $0x18] sm:$0xff] %vm351, %v671
        %738 = vst.msk [vmem:[%s293 + $0x20] sm:$0xff] %vm351, %v676
        %739 = vst.msk [vmem:[%s293 + $0x28] sm:$0xff] %vm351, %v681
        %740 = vst.msk [vmem:[%s293 + $0x30] sm:$0xff] %vm351, %v686
        %741 = vst.msk [vmem:[%s293 + $0x38] sm:$0xff] %vm351, %v691
        %742 = vst.msk [vmem:[%s293 + $0x40] sm:$0xff] %vm351, %v696
        %743 = vst.msk [vmem:[%s293 + $0x48] sm:$0xff] %vm351, %v701
        %744 = vst.msk [vmem:[%s293 + $0x50] sm:$0xff] %vm351, %v706
        %745 = vst.msk [vmem:[%s293 + $0x58] sm:$0xff] %vm351, %v711
        %746 = vst.msk [vmem:[%s293 + $0x60] sm:$0xff] %vm351, %v716
        %747 = vst.msk [vmem:[%s293 + $0x68] sm:$0xff] %vm351, %v721
        %748 = vst.msk [vmem:[%s293 + $0x70] sm:$0xff] %vm351, %v726
        %749 = vst.msk [vmem:[%s293 + $0x78] sm:$0xff] %vm351, %v731
      $region48: #{self_preact_block_forward.5} parent=39 // pred_fallthru
        _
      %p750 = scmp.eq.s32.totalorder %s23, 8
      // Predicated region
      $region49: #{self_preact_block_forward.5} parent=39 // pred_check
        %p751 = pneg %p750
      $region50: #{self_preact_block_forward.5} parent=39 // pred_check_branch
        %753 = sbr.rel (%p751) target = $region52
      $region51: #{self_preact_block_forward.5} parent=39 // pred_region
        %v754 = vld [vmem:[%s287] sm:$0xff]
        %v755 = vld [vmem:[%s287 + $0x8] sm:$0xff]
        %v756 = vld [vmem:[%s287 + $0x10] sm:$0xff]
        %v757 = vld [vmem:[%s287 + $0x18] sm:$0xff]
        %v758 = vld [vmem:[%s287 + $0x20] sm:$0xff]
        %v759 = vld [vmem:[%s287 + $0x28] sm:$0xff]
        %v760 = vld [vmem:[%s287 + $0x30] sm:$0xff]
        %v761 = vld [vmem:[%s287 + $0x38] sm:$0xff]
        %v762 = vld [vmem:[%s287 + $0x40] sm:$0xff]
        %v763 = vld [vmem:[%s287 + $0x48] sm:$0xff]
        %v764 = vld [vmem:[%s287 + $0x50] sm:$0xff]
        %v765 = vld [vmem:[%s287 + $0x58] sm:$0xff]
        %v766 = vld [vmem:[%s287 + $0x60] sm:$0xff]
        %v767 = vld [vmem:[%s287 + $0x68] sm:$0xff]
        %v768 = vld [vmem:[%s287 + $0x70] sm:$0xff]
        %v769 = vld [vmem:[%s287 + $0x78] sm:$0xff]
        %v770 = vld [vmem:[%s3] sm:$0x1]
        %v772 = vlaneseq
        %v773 = vshrl.u32 %v772, 7
        %v774 = vsub.s32 0, %v773
        %v775 = vrot.slane %v770, %v774
        %v777 = vmul.f32 %v754, %v775
        %v778 = vmul.f32 %v755, %v775
        %v779 = vmul.f32 %v756, %v775
        %v780 = vmul.f32 %v757, %v775
        %v781 = vmul.f32 %v758, %v775
        %v782 = vmul.f32 %v759, %v775
        %v783 = vmul.f32 %v760, %v775
        %v784 = vmul.f32 %v761, %v775
        %v785 = vmul.f32 %v762, %v775
        %v786 = vmul.f32 %v763, %v775
        %v787 = vmul.f32 %v764, %v775
        %v788 = vmul.f32 %v765, %v775
        %v789 = vmul.f32 %v766, %v775
        %v790 = vmul.f32 %v767, %v775
        %v791 = vmul.f32 %v768, %v775
        %v792 = vmul.f32 %v769, %v775
        %v793 = vld [vmem:[%s4] sm:$0x1]
        %v795 = vlaneseq
        %v796 = vshrl.u32 %v795, 7
        %v797 = vsub.s32 0, %v796
        %v798 = vrot.slane %v793, %v797
        %v800 = vadd.f32 %v777, %v798
        %v801 = vadd.f32 %v778, %v798
        %v802 = vadd.f32 %v779, %v798
        %v803 = vadd.f32 %v780, %v798
        %v804 = vadd.f32 %v781, %v798
        %v805 = vadd.f32 %v782, %v798
        %v806 = vadd.f32 %v783, %v798
        %v807 = vadd.f32 %v784, %v798
        %v808 = vadd.f32 %v785, %v798
        %v809 = vadd.f32 %v786, %v798
        %v810 = vadd.f32 %v787, %v798
        %v811 = vadd.f32 %v788, %v798
        %v812 = vadd.f32 %v789, %v798
        %v813 = vadd.f32 %v790, %v798
        %v814 = vadd.f32 %v791, %v798
        %v815 = vadd.f32 %v792, %v798
        %v816 = vmax.f32 %v800, 0.0
        %v817 = vmax.f32 %v801, 0.0
        %v818 = vmax.f32 %v802, 0.0
        %v819 = vmax.f32 %v803, 0.0
        %v820 = vmax.f32 %v804, 0.0
        %v821 = vmax.f32 %v805, 0.0
        %v822 = vmax.f32 %v806, 0.0
        %v823 = vmax.f32 %v807, 0.0
        %v824 = vmax.f32 %v808, 0.0
        %v825 = vmax.f32 %v809, 0.0
        %v826 = vmax.f32 %v810, 0.0
        %v827 = vmax.f32 %v811, 0.0
        %v828 = vmax.f32 %v812, 0.0
        %v829 = vmax.f32 %v813, 0.0
        %v830 = vmax.f32 %v814, 0.0
        %v831 = vmax.f32 %v815, 0.0
        %832 = vst.msk [vmem:[%s287] sm:$0xff] %vm351, %v816
        %833 = vst.msk [vmem:[%s287 + $0x8] sm:$0xff] %vm351, %v817
        %834 = vst.msk [vmem:[%s287 + $0x10] sm:$0xff] %vm351, %v818
        %835 = vst.msk [vmem:[%s287 + $0x18] sm:$0xff] %vm351, %v819
        %836 = vst.msk [vmem:[%s287 + $0x20] sm:$0xff] %vm351, %v820
        %837 = vst.msk [vmem:[%s287 + $0x28] sm:$0xff] %vm351, %v821
        %838 = vst.msk [vmem:[%s287 + $0x30] sm:$0xff] %vm351, %v822
        %839 = vst.msk [vmem:[%s287 + $0x38] sm:$0xff] %vm351, %v823
        %840 = vst.msk [vmem:[%s287 + $0x40] sm:$0xff] %vm351, %v824
        %841 = vst.msk [vmem:[%s287 + $0x48] sm:$0xff] %vm351, %v825
        %842 = vst.msk [vmem:[%s287 + $0x50] sm:$0xff] %vm351, %v826
        %843 = vst.msk [vmem:[%s287 + $0x58] sm:$0xff] %vm351, %v827
        %844 = vst.msk [vmem:[%s287 + $0x60] sm:$0xff] %vm351, %v828
        %845 = vst.msk [vmem:[%s287 + $0x68] sm:$0xff] %vm351, %v829
        %846 = vst.msk [vmem:[%s287 + $0x70] sm:$0xff] %vm351, %v830
        %847 = vst.msk [vmem:[%s287 + $0x78] sm:$0xff] %vm351, %v831
      $region52: #{self_preact_block_forward.5} parent=39 // pred_fallthru
        _
      %s848 = smul.u32 16, %s22
      %p849 = scmp.lt.s32.totalorder %s848, 15
      %s850 = scalar_select %p849, %s848, 15
      %s851 = smul.addr %s850, 8
      %s852 = scalar_lea.vmem %s5, %s851
      %s853 = smul.u32 16, %s22
      %p854 = scmp.lt.s32.totalorder %s853, 15
      %s855 = scalar_select %p854, %s853, 15
      %s856 = smul.addr %s855, 8
      %s857 = scalar_lea.vmem %s6, %s856
      // Predicated region
      $region53: #{self_preact_block_forward.5} parent=39 // pred_check
        %p858 = pneg %p160
      $region54: #{self_preact_block_forward.5} parent=39 // pred_check_branch
        %860 = sbr.rel (%p858) target = $region56
      $region55: #{self_preact_block_forward.5} parent=39 // pred_region
        %s861 = smul.u32 16, %s22
      $region56: #{self_preact_block_forward.5} parent=39 // pred_fallthru
        _
      // Predicated region
      $region57: #{self_preact_block_forward.5} parent=39 // pred_check
        %p862 = pneg %p186
      $region58: #{self_preact_block_forward.5} parent=39 // pred_check_branch
        %864 = sbr.rel (%p862) target = $region60
      $region59: #{self_preact_block_forward.5} parent=39 // pred_region
        %s865 = smul.u32 16, %s22
      $region60: #{self_preact_block_forward.5} parent=39 // pred_fallthru
        _
      // Predicated region
      $region61: #{self_preact_block_forward.5} parent=39 // pred_check
        %p866 = pneg %p160
      $region62: #{self_preact_block_forward.5} parent=39 // pred_check_branch
        %868 = sbr.rel (%p866) target = $region64
      $region63: #{self_preact_block_forward.5} parent=39 // pred_region
        %s869 = smul.u32 16, %s22
        %p870 = scmp.lt.s32.totalorder %s869, 15
        %s871 = scalar_select %p870, %s869, 15
        %s872 = smul.addr %s871, 8
        %s873 = scalar_lea.vmem %s5, %s872
      $region64: #{self_preact_block_forward.5} parent=39 // pred_fallthru
        _
      // Predicated region
      $region65: #{self_preact_block_forward.5} parent=39 // pred_check
        %p874 = pneg %p186
      $region66: #{self_preact_block_forward.5} parent=39 // pred_check_branch
        %876 = sbr.rel (%p874) target = $region68
      $region67: #{self_preact_block_forward.5} parent=39 // pred_region
        %s877 = smul.u32 16, %s22
        %p878 = scmp.lt.s32.totalorder %s877, 15
        %s879 = scalar_select %p878, %s877, 15
        %s880 = smul.addr %s879, 8
        %s881 = scalar_lea.vmem %s6, %s880
      $region68: #{self_preact_block_forward.5} parent=39 // pred_fallthru
        _
    $region40: #{self_preact_block_forward.5} parent=5 // pred_fallthru
      _
    %p882 = scmp.le.s32.totalorder 2, %s13
    // Predicated region
    $region69: #{self_preact_block_forward.5} parent=5 // pred_check
      %p883 = pneg %p882
    $region70: #{self_preact_block_forward.5} parent=5 // pred_check_branch
      %885 = sbr.rel (%p883) target = $region72
    $region71: #{self_preact_block_forward.5} parent=5 // pred_region
      %s886 = ssub.s32 %s13, 2
    $region72: #{self_preact_block_forward.5} parent=5 // pred_fallthru
      _
  $region6: #{self_preact_block_forward.5} parent=0 // loop_footer
    %s17 = sadd.s32 1, %s13
  $region7: #{self_preact_block_forward.5} parent=0 // loop_footer_branch
    %12 = sbr.rel target = $region3
  $region8: #{self_preact_block_forward.5} parent=0 // loop_exit
    _

// kernel: self_preact_block_forward.8
$region0: #{self_preact_block_forward.8}
  #allocation0 [shape = 'u32[]', space=smem, size = 0x4, offset = 0x4, fixed_abs, tag = 'smem constant byte address 0x4 - core index']
  #allocation1 [shape = 'u32[144,128]{1,0:T(1,128)}', space=vmem, size = 0x12000, scoped, tag = 'internal scratch']
  %s0 = inlined_call_operand.vmem [shape: f32[128,4], index: 0, kind: input, shape index: {}]
  %s1 = inlined_call_operand.vmem [shape: f32[8,4], index: 1, kind: input, shape index: {}]
  %s2 = inlined_call_operand.vmem [shape: f32[128,4], index: 2, kind: output, shape index: {0}]
  %s3 = inlined_call_operand.vmem [shape: f32[8,4], index: 3, kind: output, shape index: {1}]
  %4 = xla_tuple %s2, %s3
  %s5 = sld [smem:[#allocation0]]
  $region26: #{self_preact_block_forward.8} parent=0
    _
  %s7 = ssub.s32 1, %s5
  %s8 = scalar_select 0, %s7, %s5
  // Predicated region
  $region2: #{self_preact_block_forward.8} parent=0 // pred_check
    _
  $region3: #{self_preact_block_forward.8} parent=0 // pred_check_branch
    %10 = sbr.rel (0) target = $region5
  $region4: #{self_preact_block_forward.8} parent=0 // pred_region
    _
  $region5: #{self_preact_block_forward.8} parent=0 // pred_fallthru
    _
  // Predicated region
  $region6: #{self_preact_block_forward.8} parent=0 // pred_check
    _
  $region7: #{self_preact_block_forward.8} parent=0 // pred_check_branch
    %12 = sbr.rel (0) target = $region9
  $region8: #{self_preact_block_forward.8} parent=0 // pred_region
    _
  $region9: #{self_preact_block_forward.8} parent=0 // pred_fallthru
    _
  %v13 = vld [vmem:[%s0] sm:$0xff]
  %v14 = vld [vmem:[%s0 + $0x8] sm:$0xff]
  %v15 = vld [vmem:[%s0 + $0x10] sm:$0xff]
  %v16 = vld [vmem:[%s0 + $0x18] sm:$0xff]
  %v17 = vld [vmem:[%s0 + $0x20] sm:$0xff]
  %v18 = vld [vmem:[%s0 + $0x28] sm:$0xff]
  %v19 = vld [vmem:[%s0 + $0x30] sm:$0xff]
  %v20 = vld [vmem:[%s0 + $0x38] sm:$0xff]
  %v21 = vld [vmem:[%s0 + $0x40] sm:$0xff]
  %v22 = vld [vmem:[%s0 + $0x48] sm:$0xff]
  %v23 = vld [vmem:[%s0 + $0x50] sm:$0xff]
  %v24 = vld [vmem:[%s0 + $0x58] sm:$0xff]
  %v25 = vld [vmem:[%s0 + $0x60] sm:$0xff]
  %v26 = vld [vmem:[%s0 + $0x68] sm:$0xff]
  %v27 = vld [vmem:[%s0 + $0x70] sm:$0xff]
  %v28 = vld [vmem:[%s0 + $0x78] sm:$0xff]
  %v29 = vld [vmem:[%s1] sm:$0xff]
  %v31 = vcombine.high %v29, %v29
  %v33 = vunpack.c.l.s4 1966171168
  %v34 = vunpack.c.0.s8 %v33
  %v35 = vlaneseq
  %v36 = vshrl.u32 %v35, 7
  %v37 = vsub.s32 %v34, %v36
  %v38 = vrot.slane %v29, %v37
  %v40 = vunpack.c.l.s4 1966171168
  %v41 = vunpack.c.0.s8 %v40
  %v42 = vlaneseq
  %v43 = vshrl.u32 %v42, 7
  %v44 = vsub.s32 %v41, %v43
  %v45 = vrot.slane %v31, %v44
  %v46 = vcombine.high %v38, %v38
  %v47 = vcombine.high %v45, %v45
  %v49 = vunpack.c.l.s4 1966171168
  %v50 = vunpack.c.0.s8 %v49
  %v51 = vlaneseq
  %v52 = vshrl.u32 %v51, 7
  %v53 = vsub.s32 %v50, %v52
  %v54 = vrot.slane %v38, %v53
  %v56 = vunpack.c.l.s4 1966171168
  %v57 = vunpack.c.0.s8 %v56
  %v58 = vlaneseq
  %v59 = vshrl.u32 %v58, 7
  %v60 = vsub.s32 %v57, %v59
  %v61 = vrot.slane %v45, %v60
  %v63 = vunpack.c.l.s4 1966171168
  %v64 = vunpack.c.0.s8 %v63
  %v65 = vlaneseq
  %v66 = vshrl.u32 %v65, 7
  %v67 = vsub.s32 %v64, %v66
  %v68 = vrot.slane %v46, %v67
  %v70 = vunpack.c.l.s4 1966171168
  %v71 = vunpack.c.0.s8 %v70
  %v72 = vlaneseq
  %v73 = vshrl.u32 %v72, 7
  %v74 = vsub.s32 %v71, %v73
  %v75 = vrot.slane %v47, %v74
  %v76 = vcombine.high %v54, %v54
  %v77 = vcombine.high %v61, %v61
  %v78 = vcombine.high %v68, %v68
  %v79 = vcombine.high %v75, %v75
  %v80 = vlaneseq
  %v81 = vshrl.u32 %v80, 7
  %v82 = vsub.s32 0, %v81
  %v83 = vrot.slane %v54, %v82
  %v84 = vlaneseq
  %v85 = vshrl.u32 %v84, 7
  %v86 = vsub.s32 0, %v85
  %v87 = vrot.slane %v68, %v86
  %v88 = vlaneseq
  %v89 = vshrl.u32 %v88, 7
  %v90 = vsub.s32 0, %v89
  %v91 = vrot.slane %v76, %v90
  %v92 = vlaneseq
  %v93 = vshrl.u32 %v92, 7
  %v94 = vsub.s32 0, %v93
  %v95 = vrot.slane %v78, %v94
  %v96 = vlaneseq
  %v97 = vshrl.u32 %v96, 7
  %v98 = vsub.s32 0, %v97
  %v99 = vrot.slane %v61, %v98
  %v100 = vlaneseq
  %v101 = vshrl.u32 %v100, 7
  %v102 = vsub.s32 0, %v101
  %v103 = vrot.slane %v75, %v102
  %v104 = vlaneseq
  %v105 = vshrl.u32 %v104, 7
  %v106 = vsub.s32 0, %v105
  %v107 = vrot.slane %v77, %v106
  %v108 = vlaneseq
  %v109 = vshrl.u32 %v108, 7
  %v110 = vsub.s32 0, %v109
  %v111 = vrot.slane %v79, %v110
  %v120 = vmul.f32 %v13, %v83
  %v121 = vmul.f32 %v14, %v83
  %v122 = vmul.f32 %v15, %v87
  %v123 = vmul.f32 %v16, %v87
  %v124 = vmul.f32 %v17, %v91
  %v125 = vmul.f32 %v18, %v91
  %v126 = vmul.f32 %v19, %v95
  %v127 = vmul.f32 %v20, %v95
  %v128 = vmul.f32 %v21, %v99
  %v129 = vmul.f32 %v22, %v99
  %v130 = vmul.f32 %v23, %v103
  %v131 = vmul.f32 %v24, %v103
  %v132 = vmul.f32 %v25, %v107
  %v133 = vmul.f32 %v26, %v107
  %v134 = vmul.f32 %v27, %v111
  %v135 = vmul.f32 %v28, %v111
  %vm136 = vcmask 31744
  %137 = vst.msk [vmem:[%s2] sm:$0xff] %vm136, %v120
  %138 = vst.msk [vmem:[%s2 + $0x8] sm:$0xff] %vm136, %v121
  %139 = vst.msk [vmem:[%s2 + $0x10] sm:$0xff] %vm136, %v122
  %140 = vst.msk [vmem:[%s2 + $0x18] sm:$0xff] %vm136, %v123
  %141 = vst.msk [vmem:[%s2 + $0x20] sm:$0xff] %vm136, %v124
  %142 = vst.msk [vmem:[%s2 + $0x28] sm:$0xff] %vm136, %v125
  %143 = vst.msk [vmem:[%s2 + $0x30] sm:$0xff] %vm136, %v126
  %144 = vst.msk [vmem:[%s2 + $0x38] sm:$0xff] %vm136, %v127
  %145 = vst.msk [vmem:[%s2 + $0x40] sm:$0xff] %vm136, %v128
  %146 = vst.msk [vmem:[%s2 + $0x48] sm:$0xff] %vm136, %v129
  %147 = vst.msk [vmem:[%s2 + $0x50] sm:$0xff] %vm136, %v130
  %148 = vst.msk [vmem:[%s2 + $0x58] sm:$0xff] %vm136, %v131
  %149 = vst.msk [vmem:[%s2 + $0x60] sm:$0xff] %vm136, %v132
  %150 = vst.msk [vmem:[%s2 + $0x68] sm:$0xff] %vm136, %v133
  %151 = vst.msk [vmem:[%s2 + $0x70] sm:$0xff] %vm136, %v134
  %152 = vst.msk [vmem:[%s2 + $0x78] sm:$0xff] %vm136, %v135
  %v153 = vsel %vm136, %v120, 0.0
  %v154 = vsel %vm136, %v121, 0.0
  %v155 = vadd.f32 %v153, %v154
  %v156 = vrot.slane %v155, 4
  %v157 = vadd.f32 %v155, %v156
  %v158 = vrot.slane %v157, 2
  %v159 = vadd.f32 %v157, %v158
  %v160 = vrot.slane %v159, 1
  %v161 = vadd.f32 %v159, %v160
  %v162 = vsel %vm136, %v122, 0.0
  %v163 = vsel %vm136, %v123, 0.0
  %v164 = vadd.f32 %v162, %v163
  %v165 = vrot.slane %v164, 4
  %v166 = vadd.f32 %v164, %v165
  %v167 = vrot.slane %v166, 2
  %v168 = vadd.f32 %v166, %v167
  %v169 = vrot.slane %v168, 1
  %v170 = vadd.f32 %v168, %v169
  %v171 = vsel %vm136, %v124, 0.0
  %v172 = vsel %vm136, %v125, 0.0
  %v173 = vadd.f32 %v171, %v172
  %v174 = vrot.slane %v173, 4
  %v175 = vadd.f32 %v173, %v174
  %v176 = vrot.slane %v175, 2
  %v177 = vadd.f32 %v175, %v176
  %v178 = vrot.slane %v177, 1
  %v179 = vadd.f32 %v177, %v178
  %v180 = vsel %vm136, %v126, 0.0
  %v181 = vsel %vm136, %v127, 0.0
  %v182 = vadd.f32 %v180, %v181
  %v183 = vrot.slane %v182, 4
  %v184 = vadd.f32 %v182, %v183
  %v185 = vrot.slane %v184, 2
  %v186 = vadd.f32 %v184, %v185
  %v187 = vrot.slane %v186, 1
  %v188 = vadd.f32 %v186, %v187
  %v189 = vsel %vm136, %v128, 0.0
  %v190 = vsel %vm136, %v129, 0.0
  %v191 = vadd.f32 %v189, %v190
  %v192 = vrot.slane %v191, 4
  %v193 = vadd.f32 %v191, %v192
  %v194 = vrot.slane %v193, 2
  %v195 = vadd.f32 %v193, %v194
  %v196 = vrot.slane %v195, 1
  %v197 = vadd.f32 %v195, %v196
  %v198 = vsel %vm136, %v130, 0.0
  %v199 = vsel %vm136, %v131, 0.0
  %v200 = vadd.f32 %v198, %v199
  %v201 = vrot.slane %v200, 4
  %v202 = vadd.f32 %v200, %v201
  %v203 = vrot.slane %v202, 2
  %v204 = vadd.f32 %v202, %v203
  %v205 = vrot.slane %v204, 1
  %v206 = vadd.f32 %v204, %v205
  %v207 = vsel %vm136, %v132, 0.0
  %v208 = vsel %vm136, %v133, 0.0
  %v209 = vadd.f32 %v207, %v208
  %v210 = vrot.slane %v209, 4
  %v211 = vadd.f32 %v209, %v210
  %v212 = vrot.slane %v211, 2
  %v213 = vadd.f32 %v211, %v212
  %v214 = vrot.slane %v213, 1
  %v215 = vadd.f32 %v213, %v214
  %v216 = vsel %vm136, %v134, 0.0
  %v217 = vsel %vm136, %v135, 0.0
  %v218 = vadd.f32 %v216, %v217
  %v219 = vrot.slane %v218, 4
  %v220 = vadd.f32 %v218, %v219
  %v221 = vrot.slane %v220, 2
  %v222 = vadd.f32 %v220, %v221
  %v223 = vrot.slane %v222, 1
  %v224 = vadd.f32 %v222, %v223
  %v225 = vmul.f32 %v161, 0.0625
  %v226 = vmul.f32 %v170, 0.0625
  %v227 = vmul.f32 %v179, 0.0625
  %v228 = vmul.f32 %v188, 0.0625
  %v229 = vmul.f32 %v197, 0.0625
  %v230 = vmul.f32 %v206, 0.0625
  %v231 = vmul.f32 %v215, 0.0625
  %v232 = vmul.f32 %v224, 0.0625
  %vm241 = vcmask 1041409
  %v242 = vsel %vm241, %v226, %v225
  %vm243 = vcmask 1042434
  %v244 = vsel %vm243, %v227, %v242
  %vm245 = vcmask 1043459
  %v246 = vsel %vm245, %v228, %v244
  %vm247 = vcmask 1044484
  %v248 = vsel %vm247, %v229, %v246
  %vm249 = vcmask 1045509
  %v250 = vsel %vm249, %v230, %v248
  %vm251 = vcmask 1046534
  %v252 = vsel %vm251, %v231, %v250
  %vm253 = vcmask 1047559
  %v254 = vsel %vm253, %v232, %v252
  %256 = vst.msk [vmem:[%s3] sm:$0xff] %vm136, %v254
  // Predicated region
  $region10: #{self_preact_block_forward.8} parent=0 // pred_check
    _
  $region11: #{self_preact_block_forward.8} parent=0 // pred_check_branch
    %258 = sbr.rel (0) target = $region13
  $region12: #{self_preact_block_forward.8} parent=0 // pred_region
    _
  $region13: #{self_preact_block_forward.8} parent=0 // pred_fallthru
    _
  // Predicated region
  $region14: #{self_preact_block_forward.8} parent=0 // pred_check
    _
  $region15: #{self_preact_block_forward.8} parent=0 // pred_check_branch
    %260 = sbr.rel (0) target = $region17
  $region16: #{self_preact_block_forward.8} parent=0 // pred_region
    _
  $region17: #{self_preact_block_forward.8} parent=0 // pred_fallthru
    _
  // Predicated region
  $region18: #{self_preact_block_forward.8} parent=0 // pred_check
    _
  $region19: #{self_preact_block_forward.8} parent=0 // pred_check_branch
    %262 = sbr.rel (0) target = $region21
  $region20: #{self_preact_block_forward.8} parent=0 // pred_region
    _
  $region21: #{self_preact_block_forward.8} parent=0 // pred_fallthru
    _
  // Predicated region
  $region22: #{self_preact_block_forward.8} parent=0 // pred_check
    _
  $region23: #{self_preact_block_forward.8} parent=0 // pred_check_branch
    %264 = sbr.rel (0) target = $region25
  $region24: #{self_preact_block_forward.8} parent=0 // pred_region
    _
  $region25: #{self_preact_block_forward.8} parent=0 // pred_fallthru
    _

// kernel: self_preact_block_forward.9
$region0: #{self_preact_block_forward.9}
  #allocation0 [shape = 'u32[]', space=smem, size = 0x4, offset = 0x4, fixed_abs, tag = 'smem constant byte address 0x4 - core index']
  #allocation1 [shape = 'u32[144,128]{1,0:T(1,128)}', space=vmem, size = 0x12000, scoped, tag = 'internal scratch']
  %s0 = inlined_call_operand.vmem [shape: f32[2,16], index: 0, kind: input, shape index: {}]
  %s1 = inlined_call_operand.vmem [shape: f32[16,10], index: 1, kind: input, shape index: {}]
  %s2 = inlined_call_operand.vmem [shape: f32[1,10], index: 2, kind: input, shape index: {}]
  %s3 = inlined_call_operand.hbm [shape: f32[2,10], index: 3, kind: output, shape index: {}]
  %s4 = sld [smem:[#allocation0]]
  $region22: #{self_preact_block_forward.9} parent=0
    _
  %s6 = ssub.s32 1, %s4
  %s7 = scalar_select 0, %s6, %s4
  $region1: #{self_preact_block_forward.9} parent=0
    #allocation2 [shape = 'u8[1024]{0}', space=vmem, size = 0x400, scoped, tag = 'output window, operand 0, single buffered']
    #allocation3 [shape = 's32[1]{0}', space=sflag, size = 0x4, scoped, tag = 'scoped memory for self_preact_block_forward.9']
    %8 = vsyncpa [#allocation3], 0
    // Predicated region
    $region2: #{self_preact_block_forward.9} parent=1 // pred_check
      _
    $region3: #{self_preact_block_forward.9} parent=1 // pred_check_branch
      %10 = sbr.rel (0) target = $region5
    $region4: #{self_preact_block_forward.9} parent=1 // pred_region
      _
    $region5: #{self_preact_block_forward.9} parent=1 // pred_fallthru
      _
    // Predicated region
    $region6: #{self_preact_block_forward.9} parent=1 // pred_check
      _
    $region7: #{self_preact_block_forward.9} parent=1 // pred_check_branch
      %12 = sbr.rel (0) target = $region9
    $region8: #{self_preact_block_forward.9} parent=1 // pred_region
      _
    $region9: #{self_preact_block_forward.9} parent=1 // pred_fallthru
      _
    // Predicated region
    $region10: #{self_preact_block_forward.9} parent=1 // pred_check
      _
    $region11: #{self_preact_block_forward.9} parent=1 // pred_check_branch
      %14 = sbr.rel (0) target = $region13
    $region12: #{self_preact_block_forward.9} parent=1 // pred_region
      _
    $region13: #{self_preact_block_forward.9} parent=1 // pred_fallthru
      _
    %v15 = vld [vmem:[%s0] sm:$0x3]
    %v16 = vld [vmem:[%s1] sm:$0xff]
    %v17 = vld [vmem:[%s1 + $0x8] sm:$0xff]
    %v18 = vld [vmem:[%s2] sm:$0x1]
    %v20 = vlaneseq
    %v21 = vshrl.u32 %v20, 7
    %v22 = vsub.s32 0, %v21
    %v23 = vrot.slane %v18, %v22
    %vm25 = vcmask 130048
    %v27 = vsel %vm25, %v15, 0
    %29 = vmatprep.subr.mxu0 0.0
    %30 = vmatpush1.msra.mxu0 0.0
    %31 = vmatprep.subr.mxu0 0.0
    %32 = vmatpush1.msra.mxu0 0.0
    %33 = vmatprep.subr.mxu0 0.0
    %34 = vmatpush1.msra.mxu0 0.0
    %35 = vmatprep.subr.mxu0 0.0
    %36 = vmatpush1.msra.mxu0 0.0
    %37 = vmatprep.subr.mxu0 0.0
    %38 = vmatpush1.msra.mxu0 0.0
    %39 = vmatprep.subr.mxu0 0.0
    %40 = vmatpush1.msra.mxu0 0.0
    %41 = vmatprep.subr.mxu0 0.0
    %42 = vmatpush1.msra.mxu0 0.0
    %43 = vmatprep.subr.mxu0 0.0
    %44 = vmatpush1.msra.mxu0 0.0
    %45 = vmatprep.subr.mxu0 0.0
    %46 = vmatpush1.msra.mxu0 0.0
    %47 = vmatprep.subr.mxu0 0.0
    %48 = vmatpush1.msra.mxu0 0.0
    %49 = vmatprep.subr.mxu0 0.0
    %50 = vmatpush1.msra.mxu0 0.0
    %51 = vmatprep.subr.mxu0 0.0
    %52 = vmatpush1.msra.mxu0 0.0
    %53 = vmatprep.subr.mxu0 0.0
    %54 = vmatpush1.msra.mxu0 0.0
    %55 = vmatprep.subr.mxu0 0.0
    %56 = vmatpush1.msra.mxu0 0.0
    %57 = vmatprep.subr.mxu0 0.0
    %58 = vmatpush1.msra.mxu0 %v17
    %59 = vmatprep.subr.mxu0 0.0
    %60 = vmatpush1.msra.mxu0 %v16
    %61 = vmatprep.subr.mxu0 0.0
    %62 = vmatpush2.msra.mxu0 0.0
    %63 = vmatprep.subr.mxu0 0.0
    %64 = vmatpush2.msra.mxu0 0.0
    %65 = vmatprep.subr.mxu0 0.0
    %66 = vmatpush2.msra.mxu0 0.0
    %67 = vmatprep.subr.mxu0 0.0
    %68 = vmatpush2.msra.mxu0 0.0
    %69 = vmatprep.subr.mxu0 0.0
    %70 = vmatpush2.msra.mxu0 0.0
    %71 = vmatprep.subr.mxu0 0.0
    %72 = vmatpush2.msra.mxu0 0.0
    %73 = vmatprep.subr.mxu0 0.0
    %74 = vmatpush2.msra.mxu0 0.0
    %75 = vmatprep.subr.mxu0 0.0
    %76 = vmatpush2.msra.mxu0 0.0
    %77 = vmatprep.subr.mxu0 0.0
    %78 = vmatpush2.msra.mxu0 0.0
    %79 = vmatprep.subr.mxu0 0.0
    %80 = vmatpush2.msra.mxu0 0.0
    %81 = vmatprep.subr.mxu0 0.0
    %82 = vmatpush2.msra.mxu0 0.0
    %83 = vmatprep.subr.mxu0 0.0
    %84 = vmatpush2.msra.mxu0 0.0
    %85 = vmatprep.subr.mxu0 0.0
    %86 = vmatpush2.msra.mxu0 0.0
    %87 = vmatprep.subr.mxu0 0.0
    %88 = vmatpush2.msra.mxu0 0.0
    %89 = vmatprep.subr.mxu0 0.0
    %90 = vmatpush2.msra.mxu0 0.0
    %91 = vmatprep.subr.mxu0 0.0
    %92 = vmatpush2.msra.mxu0 0.0
    %93 = vmatprep.mubr.f32.mxu0 0.0
    %94 = vmatmul.mubr.f32.gmra.mxu0 %v27
    %v95 = vpop.f32.mrf.mxu0
    %v96 = vadd.f32 %v23, %v95
    %v97 = vpop.f32.mrf.mxu0
    %98 = vdwg.mxu0
    %vm99 = vcmask 74752
    %100 = vst.msk [vmem:[#allocation2] sm:$0x3] %vm99, %v96
    // Predicated region
    $region14: #{self_preact_block_forward.9} parent=1 // pred_check
      _
    $region15: #{self_preact_block_forward.9} parent=1 // pred_check_branch
      %102 = sbr.rel (0) target = $region17
    $region16: #{self_preact_block_forward.9} parent=1 // pred_region
      %s104 = ssub.s32 32, 32
      %105 = vsyncadd [#allocation3], %s104
      %s107 = sshll.u32 [#allocation2], 4
      %s108 = int_to_ptr.vmem [resolvable:$true] %s107
      %110 = dma.vmem_to_hbm [thread:$0]  %s108, 32, %s3, [#allocation3]
    $region17: #{self_preact_block_forward.9} parent=1 // pred_fallthru
      _
    // Predicated region
    $region18: #{self_preact_block_forward.9} parent=1 // pred_check
      _
    $region19: #{self_preact_block_forward.9} parent=1 // pred_check_branch
      %112 = sbr.rel (0) target = $region21
    $region20: #{self_preact_block_forward.9} parent=1 // pred_region
      %113 = dma.done [#allocation3], 32
    $region21: #{self_preact_block_forward.9} parent=1 // pred_fallthru
      _
    %114 = vsyncpa [#allocation3], 1

</llo_original>
